<compile_context>
chip_gen: v7x
topology: tpu7x:2x2x1
jax: 0.10.0
libtpu: 0.0.40
codegen_flags: <defaults>
</compile_context>

<pallas_src>
import jax
import jax.numpy as jnp
import numpy as np
from jax import lax
from jax.experimental import pallas as pl
from jax.experimental.pallas import tpu as pltpu


# (parity, tap) -> which rows/cols of the original 3x3 kernel fold into that 2x2 tap.
_TAP_SETS = {
    (0, 0): (0,),
    (0, 1): (1, 2),
    (1, 0): (0, 1),
    (1, 1): (2,),
}


def _effective_subpixel_weights(w_oihw):
    """Fold the 3x3 conv-on-upsampled weights into per-subpixel 2x2 weights.

    w_oihw: (Cout, Cin, 3, 3) -> (2, 2, 2, 2, Cin, Cout) indexed [a, b, dy, dx] with
      y[n, 2i+a, 2j+b] = sum_{dy,dx} x_pad[n, i+a+dy, j+b+dx] @ W_eff[a, b, dy, dx] + bias
    where x_pad is the input zero-padded by 1 pixel in H and W.
    """
    w = jnp.transpose(w_oihw, (2, 3, 1, 0))            # (ky, kx, Cin, Cout)
    rows_a = []
    for a in range(2):
        rows_b = []
        for b in range(2):
            taps = []
            for dy in range(2):
                for dx in range(2):
                    acc = None
                    for ky in _TAP_SETS[(a, dy)]:
                        for kx in _TAP_SETS[(b, dx)]:
                            acc = w[ky, kx] if acc is None else acc + w[ky, kx]
                    taps.append(acc)                   # (Cin, Cout)
            rows_b.append(jnp.stack(taps, 0).reshape(2, 2, w.shape[2], w.shape[3]))
        rows_a.append(jnp.stack(rows_b, 0))            # (2, 2, 2, Cin, Cout)
    return jnp.stack(rows_a, 0)                        # (2, 2, 2, 2, Cin, Cout)


def _im2col_weights(w_eff):
    """Scatter the folded sub-pixel weights into one (9*Cin, 4*Cout) matrix so a single
    MXU dot produces all four sub-pixel planes (small-channel path).
    Row index = (p*3 + q)*Cin + cin over absolute padded-input offsets (p, q);
    col index = (a*2 + b)*Cout + cout over the sub-pixel planes."""
    _, _, _, _, cin, cout = w_eff.shape
    w_big = jnp.zeros((3, 3, cin, 2, 2, cout), w_eff.dtype)
    for a in range(2):
        for b in range(2):
            for dy in range(2):
                for dx in range(2):
                    w_big = w_big.at[a + dy, b + dx, :, a, b, :].set(w_eff[a, b, dy, dx])
    return w_big.reshape(9 * cin, 4 * cout)


def _pick_block_rows(H, W, cin, itemsize=4, m_target=1024, slab_budget=2 << 20):
    """Largest divisor TILE_H of H with matmul M = TILE_H*W <= m_target and a per-tap
    activation slab (TILE_H*W, Cin) inside a small VMEM budget (bounds temporaries)."""
    best = 1
    for d in range(1, H + 1):
        if H % d:
            continue
        m = d * W
        if m <= max(W, m_target) and m * cin * itemsize <= max(W * cin * itemsize, slab_budget):
            best = d
    return best


def _fused_upsample_conv3x3(x_pad, w_eff, bias, block_rows, out_dtype=None,
                            use_im2col=None):
    """Fused nearest-2x upsample + 3x3 conv (padding=1).

    x_pad: (N, H+2, W+2, Cin) zero-padded channels-last input.
    w_eff: (2, 2, 2, 2, Cin, Cout) folded sub-pixel weights; bias: (Cout,).
    Returns y_sub: (N, 2, 2, H, W, Cout) with y_sub[n, a, b, i, j] = y[n, 2i+a, 2j+b].
    """
    N, Hp, Wp, Cin = x_pad.shape
    H, W = Hp - 2, Wp - 2
    Cout = w_eff.shape[-1]
    TH = block_rows
    assert H % TH == 0, (H, TH)
    num_tiles = H // TH
    M = TH * W
    out_dtype = out_dtype or x_pad.dtype
    bias2 = bias.reshape(1, Cout).astype(jnp.float32)

    if use_im2col is None:
        # One (M, 9*Cin)@(9*Cin, 4*Cout) dot (single MXU K-pass) beats 16 thin per-tap
        # dots when the folded contraction still fits one 256-wide pass.  For wide
        # channels the per-tap dots keep the MAC count minimal (16 vs 36 per input
        # pixel) and avoid materialising the im2col slab.
        use_im2col = (9 * Cin) <= 256

    if use_im2col:
        w_arg = _im2col_weights(w_eff)                              # (9*Cin, 4*Cout)
        w_spec = pl.BlockSpec((9 * Cin, 4 * Cout), lambda n, t: (0, 0))
    else:
        w_arg = w_eff                                               # (2,2,2,2,Cin,Cout)
        w_spec = pl.BlockSpec((2, 2, 2, 2, Cin, Cout), lambda n, t: (0, 0, 0, 0, 0, 0))

    def kernel(xp_ref, w_ref, b_ref, o_ref):
        t = pl.program_id(1)
        r0 = pl.multiple_of(t * TH, TH)          # first input row of this tile
        bias_v = b_ref[...]                      # (1, Cout), hoisted once per step

        def window(p, q):
            # Padded-input slab: rows [r0+p, r0+p+TH), cols [q, q+W); static tap shift.
            return xp_ref[0, pl.ds(r0 + p, TH), pl.ds(q, W), :].reshape(M, Cin)

        if use_im2col:
            # All 9 shifted windows -> one im2col slab -> ONE MXU dot for all 4 planes.
            act = jnp.concatenate(
                [window(p, q) for p in range(3) for q in range(3)], axis=-1)  # (M, 9*Cin)
            res = jnp.dot(act, w_ref[...],
                          preferred_element_type=jnp.float32)                 # (M, 4*Cout)
            for a in range(2):
                for b in range(2):
                    c0 = (2 * a + b) * Cout
                    plane = res[:, c0:c0 + Cout] + bias_v
                    o_ref[0, a, b] = plane.reshape(TH, W, Cout).astype(o_ref.dtype)
        else:
            # 4 sub-pixel planes; each is 4 fat dots (M x Cin)@(Cin x Cout), f32 accum.
            for a in range(2):
                for b in range(2):
                    acc = None
                    for dy in range(2):
                        for dx in range(2):
                            d = jnp.dot(window(a + dy, b + dx), w_ref[a, b, dy, dx],
                                        preferred_element_type=jnp.float32)
                            acc = d if acc is None else acc + d
                    acc = acc + bias_v
                    o_ref[0, a, b] = acc.reshape(TH, W, Cout).astype(o_ref.dtype)

    # Rough VMEM working set: resident padded image (double-buffered) + output tile
    # (double-buffered) + weights + in-flight slab/accumulator temporaries.
    itemsize = x_pad.dtype.itemsize
    in_block = Hp * Wp * Cin * itemsize
    out_block = 4 * M * Cout * np.dtype(out_dtype).itemsize
    w_bytes = int(np.prod(w_arg.shape)) * w_arg.dtype.itemsize
    tmp = ((22 * M * Cin + 6 * M * Cout) if use_im2col
           else (8 * M * Cin + 4 * M * Cout)) * 4
    est_vmem = 2 * in_block + 2 * out_block + w_bytes + tmp
    params = dict(dimension_semantics=("parallel", "parallel"))
    if est_vmem > 30 * 1024 * 1024:
        # TODO(synk): for very large feature maps the whole-padded-image-per-batch
        # BlockSpec should switch to halo-tiled row fetches; until then just raise the
        # scoped-VMEM limit (test shapes never hit this).
        params["vmem_limit_bytes"] = int(min(est_vmem + (8 << 20), 100 * 1024 * 1024))

    macs_per_pixel = 36 if use_im2col else 16
    cost = pl.CostEstimate(
        flops=int(2 * macs_per_pixel * N * H * W * Cin * Cout),
        transcendentals=0,
        bytes_accessed=int(x_pad.size * itemsize + w_bytes
                           + N * 4 * H * W * Cout * np.dtype(out_dtype).itemsize),
    )

    return pl.pallas_call(
        kernel,
        out_shape=jax.ShapeDtypeStruct((N, 2, 2, H, W, Cout), out_dtype),
        grid=(N, num_tiles),
        in_specs=[
            # Whole padded input image per batch element; block index is constant across
            # the row-tile axis so it is DMA'd once per n and stays VMEM-resident.
            pl.BlockSpec((1, Hp, Wp, Cin), lambda n, t: (n, 0, 0, 0)),
            w_spec,
            pl.BlockSpec((1, Cout), lambda n, t: (0, 0)),
        ],
        out_specs=pl.BlockSpec((1, 2, 2, TH, W, Cout), lambda n, t: (n, 0, 0, t, 0, 0)),
        compiler_params=pltpu.CompilerParams(**params),
        cost_estimate=cost,
    )(x_pad, w_arg, bias2)


def _nearest2x_subpixel(x_nhwc, block_rows):
    """Pure nearest-2x upsample (use_conv=False path). Returns (N, 2, 2, H, W, C)."""
    N, H, W, C = x_nhwc.shape
    TH = block_rows
    assert H % TH == 0, (H, TH)

    def kernel(x_ref, o_ref):
        v = x_ref[0]                             # (TH, W, C)
        for a in range(2):
            for b in range(2):
                o_ref[0, a, b] = v               # pure data movement, no matmul

    return pl.pallas_call(
        kernel,
        out_shape=jax.ShapeDtypeStruct((N, 2, 2, H, W, C), x_nhwc.dtype),
        grid=(N, H // TH),
        in_specs=[pl.BlockSpec((1, TH, W, C), lambda n, t: (n, t, 0, 0))],
        out_specs=pl.BlockSpec((1, 2, 2, TH, W, C), lambda n, t: (n, 0, 0, t, 0, 0)),
        compiler_params=pltpu.CompilerParams(
            dimension_semantics=("parallel", "parallel")),
    )(x_nhwc)


def _subpixel_to_nchw(y_sub):
    """(N, 2, 2, H, W, C) sub-pixel planes -> (N, C, 2H, 2W). Single output transpose."""
    N, _, _, H, W, C = y_sub.shape
    y = jnp.transpose(y_sub, (0, 5, 3, 1, 4, 2))      # (N, C, H, 2, W, 2)
    return y.reshape(N, C, 2 * H, 2 * W)


def upsample_forward(x_nchw, conv_weight_oihw=None, conv_bias=None,
                     channels=None, use_conv=True, block_rows=None,
                     compute_dtype=None, use_im2col=None):
    """Pallas port of Upsample.forward for dims=2 (the UnifiedUNetModel configuration).
    x: (N, C, H, W) -> (N, out_channels, 2H, 2W)."""
    # TODO(synk): dims=1 and dims=3 (third_up temporal) interpolate paths not implemented.
    N, C, H, W = x_nchw.shape
    if channels is not None:
        assert C == channels
    x = jnp.transpose(x_nchw, (0, 2, 3, 1))           # NCHW -> NHWC (small input, glue)

    if not use_conv:
        th = block_rows or _pick_block_rows(H, W, C)
        return _subpixel_to_nchw(_nearest2x_subpixel(x, th))

    # 1-pixel zero pad of the SMALL input (the padded 2x-upsampled intermediate of an
    # unfused implementation never exists).
    x_pad = jnp.pad(x, ((0, 0), (1, 1), (1, 1), (0, 0)))
    w_eff = _effective_subpixel_weights(conv_weight_oihw)        # (2,2,2,2,Cin,Cout)
    if compute_dtype is not None:
        # Optional bf16 operands (f32 accumulation kept via preferred_element_type).
        x_pad = x_pad.astype(compute_dtype)
        w_eff = w_eff.astype(compute_dtype)
    th = block_rows or _pick_block_rows(H, W, C, itemsize=x_pad.dtype.itemsize)
    y_sub = _fused_upsample_conv3x3(x_pad, w_eff, conv_bias, th,
                                    out_dtype=x_nchw.dtype, use_im2col=use_im2col)
    return _subpixel_to_nchw(y_sub)


def _reference(x_nchw, w_oihw=None, bias=None, use_conv=True):
    """Pure-JAX reference of the same forward pass (verification only)."""
    u = jnp.repeat(jnp.repeat(x_nchw, 2, axis=2), 2, axis=3)
    if not use_conv:
        return u
    y = lax.conv_general_dilated(
        u, w_oihw, window_strides=(1, 1), padding=((1, 1), (1, 1)),
        dimension_numbers=("NCHW", "OIHW", "NCHW"),
        precision=lax.Precision.HIGHEST)
    return y + bias.reshape(1, -1, 1, 1)


if __name__ == "__main__":
    key = jax.random.PRNGKey(0)
    k_x, k_w, k_b, k_x2, k_w2, k_b2 = jax.random.split(key, 6)

    # --- small-channel shape: auto-selects the single im2col-dot path --------------
    N, C, H, W = 2, 4, 16, 16          # channels=4, spatial=16
    out_channels = C                   # module default: out_channels = channels

    x = jax.random.normal(k_x, (N, C, H, W), dtype=jnp.float32)
    conv_w = 0.1 * jax.random.normal(k_w, (out_channels, C, 3, 3), dtype=jnp.float32)
    conv_b = 0.1 * jax.random.normal(k_b, (out_channels,), dtype=jnp.float32)

    ref = _reference(x, conv_w, conv_b, use_conv=True)

    out = jax.block_until_ready(
        upsample_forward(x, conv_w, conv_b, channels=C, use_conv=True))
    assert out.shape == (N, out_channels, 2 * H, 2 * W)
    np.testing.assert_allclose(np.asarray(out), np.asarray(ref), rtol=1e-2, atol=1e-2)

    # Explicit multi-row-tile configuration + forced per-tap (wide-channel) kernel
    # variant (exercises dynamic row-tile indexing and the second MXU path).
    out_tap = jax.block_until_ready(
        upsample_forward(x, conv_w, conv_b, channels=C, use_conv=True,
                         block_rows=4, use_im2col=False))
    np.testing.assert_allclose(np.asarray(out_tap), np.asarray(ref), rtol=1e-2, atol=1e-2)

    # --- wider-channel shape: auto-selects the per-tap path (9*Cin > 256) ----------
    N2, C2, H2, W2 = 1, 32, 8, 8
    x2 = jax.random.normal(k_x2, (N2, C2, H2, W2), dtype=jnp.float32)
    w2 = 0.05 * jax.random.normal(k_w2, (C2, C2, 3, 3), dtype=jnp.float32)
    b2 = 0.05 * jax.random.normal(k_b2, (C2,), dtype=jnp.float32)
    ref2 = _reference(x2, w2, b2, use_conv=True)
    out2 = jax.block_until_ready(
        upsample_forward(x2, w2, b2, channels=C2, use_conv=True))
    np.testing.assert_allclose(np.asarray(out2), np.asarray(ref2), rtol=1e-2, atol=1e-2)

    # --- use_conv=False path (pure nearest upsample), as in ResBlock.h_upd / x_upd --
    out_nc = jax.block_until_ready(
        upsample_forward(x, use_conv=False, channels=C, block_rows=8))
    ref_nc = _reference(x, use_conv=False)
    np.testing.assert_allclose(np.asarray(out_nc), np.asarray(ref_nc), rtol=0, atol=0)

    print("KERNEL_OK")
</pallas_src>

<mosaic_0001>
module attributes {stable_mosaic.version = 11 : i64} {
  func.func @kernel(%arg0: i32, %arg1: i32, %arg2: memref<1x18x18x4xf32, #tpu.memory_space<vmem>>, %arg3: memref<36x16xf32, #tpu.memory_space<vmem>>, %arg4: memref<1x4xf32, #tpu.memory_space<vmem>>, %arg5: memref<1x2x2x16x16x4xf32, #tpu.memory_space<vmem>>) attributes {dimension_semantics = [#tpu.dimension_semantics<parallel>, #tpu.dimension_semantics<parallel>], iteration_bounds = array<i64: 2, 1>, scalar_prefetch = 0 : i64, scratch_operands = 0 : i64, tpu.core_type = #tpu.core_type<tc>, window_params = [{transform_indices = @transform_0, window_bounds = array<i64: 1, 18, 18, 4>}, {pipeline_mode = #tpu.pipeline_mode<synchronous>, transform_indices = @transform_1, window_bounds = array<i64: 36, 16>}, {pipeline_mode = #tpu.pipeline_mode<synchronous>, transform_indices = @transform_2, window_bounds = array<i64: 1, 4>}, {transform_indices = @transform_3, window_bounds = array<i64: 1, 2, 2, 16, 16, 4>}]} {
    %c16_i32 = arith.constant 16 : i32
    %0 = arith.muli %arg1, %c16_i32 : i32
    %1 = tpu.assume_multiple %0, 16 : i32
    %c0 = arith.constant 0 : index
    %c0_0 = arith.constant 0 : index
    %2 = vector.load %arg4[%c0, %c0_0] : memref<1x4xf32, #tpu.memory_space<vmem>>, vector<1x4xf32>
    %c0_i32 = arith.constant 0 : i32
    %3 = arith.addi %1, %c0_i32 : i32
    %c0_1 = arith.constant 0 : index
    %4 = arith.index_cast %3 : i32 to index
    %c0_2 = arith.constant 0 : index
    %c0_3 = arith.constant 0 : index
    %5 = vector.load %arg2[%c0_1, %4, %c0_2, %c0_3] : memref<1x18x18x4xf32, #tpu.memory_space<vmem>>, vector<1x16x16x4xf32>
    %6 = vector.shape_cast %5 : vector<1x16x16x4xf32> to vector<16x16x4xf32>
    %7 = vector.shape_cast %6 : vector<16x16x4xf32> to vector<256x4xf32>
    %c0_i32_4 = arith.constant 0 : i32
    %8 = arith.addi %1, %c0_i32_4 : i32
    %c0_5 = arith.constant 0 : index
    %9 = arith.index_cast %8 : i32 to index
    %c1 = arith.constant 1 : index
    %c0_6 = arith.constant 0 : index
    %10 = vector.load %arg2[%c0_5, %9, %c1, %c0_6] : memref<1x18x18x4xf32, #tpu.memory_space<vmem>>, vector<1x16x16x4xf32>
    %11 = vector.shape_cast %10 : vector<1x16x16x4xf32> to vector<16x16x4xf32>
    %12 = vector.shape_cast %11 : vector<16x16x4xf32> to vector<256x4xf32>
    %c0_i32_7 = arith.constant 0 : i32
    %13 = arith.addi %1, %c0_i32_7 : i32
    %c0_8 = arith.constant 0 : index
    %14 = arith.index_cast %13 : i32 to index
    %c2 = arith.constant 2 : index
    %c0_9 = arith.constant 0 : index
    %15 = vector.load %arg2[%c0_8, %14, %c2, %c0_9] : memref<1x18x18x4xf32, #tpu.memory_space<vmem>>, vector<1x16x16x4xf32>
    %16 = vector.shape_cast %15 : vector<1x16x16x4xf32> to vector<16x16x4xf32>
    %17 = vector.shape_cast %16 : vector<16x16x4xf32> to vector<256x4xf32>
    %c1_i32 = arith.constant 1 : i32
    %18 = arith.addi %1, %c1_i32 : i32
    %c0_10 = arith.constant 0 : index
    %19 = arith.index_cast %18 : i32 to index
    %c0_11 = arith.constant 0 : index
    %c0_12 = arith.constant 0 : index
    %20 = vector.load %arg2[%c0_10, %19, %c0_11, %c0_12] : memref<1x18x18x4xf32, #tpu.memory_space<vmem>>, vector<1x16x16x4xf32>
    %21 = vector.shape_cast %20 : vector<1x16x16x4xf32> to vector<16x16x4xf32>
    %22 = vector.shape_cast %21 : vector<16x16x4xf32> to vector<256x4xf32>
    %c1_i32_13 = arith.constant 1 : i32
    %23 = arith.addi %1, %c1_i32_13 : i32
    %c0_14 = arith.constant 0 : index
    %24 = arith.index_cast %23 : i32 to index
    %c1_15 = arith.constant 1 : index
    %c0_16 = arith.constant 0 : index
    %25 = vector.load %arg2[%c0_14, %24, %c1_15, %c0_16] : memref<1x18x18x4xf32, #tpu.memory_space<vmem>>, vector<1x16x16x4xf32>
    %26 = vector.shape_cast %25 : vector<1x16x16x4xf32> to vector<16x16x4xf32>
    %27 = vector.shape_cast %26 : vector<16x16x4xf32> to vector<256x4xf32>
    %c1_i32_17 = arith.constant 1 : i32
    %28 = arith.addi %1, %c1_i32_17 : i32
    %c0_18 = arith.constant 0 : index
    %29 = arith.index_cast %28 : i32 to index
    %c2_19 = arith.constant 2 : index
    %c0_20 = arith.constant 0 : index
    %30 = vector.load %arg2[%c0_18, %29, %c2_19, %c0_20] : memref<1x18x18x4xf32, #tpu.memory_space<vmem>>, vector<1x16x16x4xf32>
    %31 = vector.shape_cast %30 : vector<1x16x16x4xf32> to vector<16x16x4xf32>
    %32 = vector.shape_cast %31 : vector<16x16x4xf32> to vector<256x4xf32>
    %c2_i32 = arith.constant 2 : i32
    %33 = arith.addi %1, %c2_i32 : i32
    %c0_21 = arith.constant 0 : index
    %34 = arith.index_cast %33 : i32 to index
    %c0_22 = arith.constant 0 : index
    %c0_23 = arith.constant 0 : index
    %35 = vector.load %arg2[%c0_21, %34, %c0_22, %c0_23] : memref<1x18x18x4xf32, #tpu.memory_space<vmem>>, vector<1x16x16x4xf32>
    %36 = vector.shape_cast %35 : vector<1x16x16x4xf32> to vector<16x16x4xf32>
    %37 = vector.shape_cast %36 : vector<16x16x4xf32> to vector<256x4xf32>
    %c2_i32_24 = arith.constant 2 : i32
    %38 = arith.addi %1, %c2_i32_24 : i32
    %c0_25 = arith.constant 0 : index
    %39 = arith.index_cast %38 : i32 to index
    %c1_26 = arith.constant 1 : index
    %c0_27 = arith.constant 0 : index
    %40 = vector.load %arg2[%c0_25, %39, %c1_26, %c0_27] : memref<1x18x18x4xf32, #tpu.memory_space<vmem>>, vector<1x16x16x4xf32>
    %41 = vector.shape_cast %40 : vector<1x16x16x4xf32> to vector<16x16x4xf32>
    %42 = vector.shape_cast %41 : vector<16x16x4xf32> to vector<256x4xf32>
    %c2_i32_28 = arith.constant 2 : i32
    %43 = arith.addi %1, %c2_i32_28 : i32
    %c0_29 = arith.constant 0 : index
    %44 = arith.index_cast %43 : i32 to index
    %c2_30 = arith.constant 2 : index
    %c0_31 = arith.constant 0 : index
    %45 = vector.load %arg2[%c0_29, %44, %c2_30, %c0_31] : memref<1x18x18x4xf32, #tpu.memory_space<vmem>>, vector<1x16x16x4xf32>
    %46 = vector.shape_cast %45 : vector<1x16x16x4xf32> to vector<16x16x4xf32>
    %47 = vector.shape_cast %46 : vector<16x16x4xf32> to vector<256x4xf32>
    %48 = tpu.concatenate %7, %12, %17, %22, %27, %32, %37, %42, %47 in 1 : vector<256x4xf32>, vector<256x4xf32>, vector<256x4xf32>, vector<256x4xf32>, vector<256x4xf32>, vector<256x4xf32>, vector<256x4xf32>, vector<256x4xf32>, vector<256x4xf32> -> vector<256x36xf32>
    %c0_32 = arith.constant 0 : index
    %c0_33 = arith.constant 0 : index
    %49 = vector.load %arg3[%c0_32, %c0_33] : memref<36x16xf32, #tpu.memory_space<vmem>>, vector<36x16xf32>
    %cst = arith.constant dense<0.000000e+00> : vector<256x16xf32>
    %50 = tpu.matmul %48, %49, %cst {dimension_numbers = #tpu.dot_dimension_numbers<[1], [0], [0], [1], [0, 0, 1, 1], [], []>} : vector<256x36xf32>, vector<36x16xf32>, vector<256x16xf32> -> vector<256x16xf32>
    %51 = vector.extract_strided_slice %50 {offsets = [0, 0], sizes = [256, 4], strides = [1, 1]} : vector<256x16xf32> to vector<256x4xf32>
    %52 = vector.broadcast %2 : vector<1x4xf32> to vector<256x4xf32>
    %53 = arith.addf %51, %52 : vector<256x4xf32>
    %54 = vector.shape_cast %53 : vector<256x4xf32> to vector<16x16x4xf32>
    %c0_34 = arith.constant 0 : index
    %c0_35 = arith.constant 0 : index
    %c0_36 = arith.constant 0 : index
    %c0_37 = arith.constant 0 : index
    %c0_38 = arith.constant 0 : index
    %c0_39 = arith.constant 0 : index
    %55 = vector.load %arg5[%c0_34, %c0_35, %c0_36, %c0_37, %c0_38, %c0_39] : memref<1x2x2x16x16x4xf32, #tpu.memory_space<vmem>>, vector<1x1x1x16x16x4xf32>
    %56 = vector.shape_cast %55 : vector<1x1x1x16x16x4xf32> to vector<16x16x4xf32>
    %57 = vector.shape_cast %54 : vector<16x16x4xf32> to vector<1x1x1x16x16x4xf32>
    tpu.vector_store %arg5[%c0_34, %c0_35, %c0_36, %c0_37, %c0_38, %c0_39], %57 {strides = array<i32>} : memref<1x2x2x16x16x4xf32, #tpu.memory_space<vmem>>, vector<1x1x1x16x16x4xf32>,
    %58 = vector.extract_strided_slice %50 {offsets = [0, 4], sizes = [256, 4], strides = [1, 1]} : vector<256x16xf32> to vector<256x4xf32>
    %59 = vector.broadcast %2 : vector<1x4xf32> to vector<256x4xf32>
    %60 = arith.addf %58, %59 : vector<256x4xf32>
    %61 = vector.shape_cast %60 : vector<256x4xf32> to vector<16x16x4xf32>
    %c0_40 = arith.constant 0 : index
    %c0_41 = arith.constant 0 : index
    %c1_42 = arith.constant 1 : index
    %c0_43 = arith.constant 0 : index
    %c0_44 = arith.constant 0 : index
    %c0_45 = arith.constant 0 : index
    %62 = vector.load %arg5[%c0_40, %c0_41, %c1_42, %c0_43, %c0_44, %c0_45] : memref<1x2x2x16x16x4xf32, #tpu.memory_space<vmem>>, vector<1x1x1x16x16x4xf32>
    %63 = vector.shape_cast %62 : vector<1x1x1x16x16x4xf32> to vector<16x16x4xf32>
    %64 = vector.shape_cast %61 : vector<16x16x4xf32> to vector<1x1x1x16x16x4xf32>
    tpu.vector_store %arg5[%c0_40, %c0_41, %c1_42, %c0_43, %c0_44, %c0_45], %64 {strides = array<i32>} : memref<1x2x2x16x16x4xf32, #tpu.memory_space<vmem>>, vector<1x1x1x16x16x4xf32>,
    %65 = vector.extract_strided_slice %50 {offsets = [0, 8], sizes = [256, 4], strides = [1, 1]} : vector<256x16xf32> to vector<256x4xf32>
    %66 = vector.broadcast %2 : vector<1x4xf32> to vector<256x4xf32>
    %67 = arith.addf %65, %66 : vector<256x4xf32>
    %68 = vector.shape_cast %67 : vector<256x4xf32> to vector<16x16x4xf32>
    %c0_46 = arith.constant 0 : index
    %c1_47 = arith.constant 1 : index
    %c0_48 = arith.constant 0 : index
    %c0_49 = arith.constant 0 : index
    %c0_50 = arith.constant 0 : index
    %c0_51 = arith.constant 0 : index
    %69 = vector.load %arg5[%c0_46, %c1_47, %c0_48, %c0_49, %c0_50, %c0_51] : memref<1x2x2x16x16x4xf32, #tpu.memory_space<vmem>>, vector<1x1x1x16x16x4xf32>
    %70 = vector.shape_cast %69 : vector<1x1x1x16x16x4xf32> to vector<16x16x4xf32>
    %71 = vector.shape_cast %68 : vector<16x16x4xf32> to vector<1x1x1x16x16x4xf32>
    tpu.vector_store %arg5[%c0_46, %c1_47, %c0_48, %c0_49, %c0_50, %c0_51], %71 {strides = array<i32>} : memref<1x2x2x16x16x4xf32, #tpu.memory_space<vmem>>, vector<1x1x1x16x16x4xf32>,
    %72 = vector.extract_strided_slice %50 {offsets = [0, 12], sizes = [256, 4], strides = [1, 1]} : vector<256x16xf32> to vector<256x4xf32>
    %73 = vector.broadcast %2 : vector<1x4xf32> to vector<256x4xf32>
    %74 = arith.addf %72, %73 : vector<256x4xf32>
    %75 = vector.shape_cast %74 : vector<256x4xf32> to vector<16x16x4xf32>
    %c0_52 = arith.constant 0 : index
    %c1_53 = arith.constant 1 : index
    %c1_54 = arith.constant 1 : index
    %c0_55 = arith.constant 0 : index
    %c0_56 = arith.constant 0 : index
    %c0_57 = arith.constant 0 : index
    %76 = vector.load %arg5[%c0_52, %c1_53, %c1_54, %c0_55, %c0_56, %c0_57] : memref<1x2x2x16x16x4xf32, #tpu.memory_space<vmem>>, vector<1x1x1x16x16x4xf32>
    %77 = vector.shape_cast %76 : vector<1x1x1x16x16x4xf32> to vector<16x16x4xf32>
    %78 = vector.shape_cast %75 : vector<16x16x4xf32> to vector<1x1x1x16x16x4xf32>
    tpu.vector_store %arg5[%c0_52, %c1_53, %c1_54, %c0_55, %c0_56, %c0_57], %78 {strides = array<i32>} : memref<1x2x2x16x16x4xf32, #tpu.memory_space<vmem>>, vector<1x1x1x16x16x4xf32>,
    return
  }
  func.func @transform_0(%arg0: i32, %arg1: i32) -> (i32, i32, i32, i32) {
    %c0_i32 = arith.constant 0 : i32
    %c0_i32_0 = arith.constant 0 : i32
    %c0_i32_1 = arith.constant 0 : i32
    %c0_i32_2 = arith.constant 0 : i32
    return %arg0, %c0_i32, %c0_i32_0, %c0_i32_1 : i32, i32, i32, i32
  }
  func.func @transform_1(%arg0: i32, %arg1: i32) -> (i32, i32) {
    %c0_i32 = arith.constant 0 : i32
    %c0_i32_0 = arith.constant 0 : i32
    %c0_i32_1 = arith.constant 0 : i32
    return %c0_i32, %c0_i32_0 : i32, i32
  }
  func.func @transform_2(%arg0: i32, %arg1: i32) -> (i32, i32) {
    %c0_i32 = arith.constant 0 : i32
    %c0_i32_0 = arith.constant 0 : i32
    %c0_i32_1 = arith.constant 0 : i32
    return %c0_i32, %c0_i32_0 : i32, i32
  }
  func.func @transform_3(%arg0: i32, %arg1: i32) -> (i32, i32, i32, i32, i32, i32) {
    %c0_i32 = arith.constant 0 : i32
    %c0_i32_0 = arith.constant 0 : i32
    %c0_i32_1 = arith.constant 0 : i32
    %c0_i32_2 = arith.constant 0 : i32
    %c0_i32_3 = arith.constant 0 : i32
    return %arg0, %c0_i32, %c0_i32_0, %arg1, %c0_i32_1, %c0_i32_2 : i32, i32, i32, i32, i32, i32
  }
}

</mosaic_0001>

<llo_original>
// kernel: tpu_custom_call.1
$region0: #{tpu_custom_call.1}
  #allocation0 [shape = 'u32[]', space=smem, size = 0x4, offset = 0x4, fixed_abs, tag = 'smem constant byte address 0x4 - core index']
  #allocation1 [shape = 'u32[144,128]{1,0:T(1,128)}', space=vmem, size = 0x12000, scoped, tag = 'internal scratch']
  %s0 = inlined_call_operand.vmem [shape: f32[2,18,18,4], index: 0, kind: input, shape index: {}]
  %s1 = inlined_call_operand.vmem [shape: f32[36,16], index: 1, kind: input, shape index: {}]
  %s2 = inlined_call_operand.vmem [shape: f32[1,4], index: 2, kind: input, shape index: {}]
  %s3 = inlined_call_operand.vmem [shape: f32[2,2,2,16,16,4], index: 3, kind: output, shape index: {}]
  %s4 = sld [smem:[#allocation0]]
  $region45: #{tpu_custom_call.1} parent=0
    _
  %s6 = ssub.s32 1, %s4
  %s7 = scalar_select 0, %s6, %s4
  loop: start=0, step=1, limit=4
  $region2: #{tpu_custom_call.1} parent=0 // loop_pre_header
    _
  $region3: #{tpu_custom_call.1} parent=0 // loop_header
    %s9 = sphi 0, %s13
    %p10 = scmp.ge.s32.totalorder %s9, 4
    %s16 = sphi 0, %s28
    %s17 = sphi 0, %s24
    %s18 = sphi 0, %s16
    %s19 = sphi 0, %s17
    %s20 = sphi 0, %s18
    %s21 = sphi 0, %s19
    %s31 = sphi 0, %s33
    %s34 = sphi 0, %s31
    %s35 = sphi 0, %s34
    %s51 = sphi 0, %s35
    %s55 = sphi 0, %s55
    %s57 = sphi 0, %s55
    %s58 = sphi 0, %s57
    %s72 = sphi 0, %s58
    %s76 = sphi 0, %s76
    %s78 = sphi 0, %s76
    %s79 = sphi 0, %s78
    %s93 = sphi 0, %s79
    %s101 = sphi 0, %s103
    %s104 = sphi 0, %s101
    %s105 = sphi 0, %s104
    %s121 = sphi 0, %s105
  $region4: #{tpu_custom_call.1} parent=0 // loop_header_branch
    %12 = sbr.rel (%p10) target = $region8
  $region5: #{tpu_custom_call.1} parent=0 // loop_body
    %s14 = ssub.s32 %s9, 1
    %s15 = ssub.s32 %s9, 2
    %s22 = sadd.s32 1, %s17
    %p23 = scmp.ge.s32.totalorder %s22, 1
    %s24 = scalar_select %p23, 0, %s22
    %s25 = sadd.s32 1, %s16
    %s26 = scalar_select %p23, %s25, %s16
    %p27 = scmp.ge.s32.totalorder %s26, 2
    %s28 = scalar_select %p27, 0, %s26
    %s29 = ssub.s32 %s16, %s28
    %p30 = scmp.eq.s32.totalorder %s29, 0
    %s32 = sadd.s32 %s31, 1
    %s33 = scalar_select %p30, %s31, %s32
    %p36 = pneg %p30
    %p37 = scmp.eq.s32.totalorder %s9, 1
    %p38 = por %p36, %p37
    %p39 = scmp.ne.s32.totalorder %s31, %s34
    %p40 = scmp.eq.s32.totalorder %s9, 0
    %p41 = por %p39, %p40
    %p42 = scmp.ne.s32.totalorder %s31, %s34
    %p43 = scmp.eq.s32.totalorder %s14, 1
    %p44 = por %p42, %p43
    %p45 = scmp.ne.s32.totalorder %s34, %s35
    %p46 = scmp.eq.s32.totalorder %s14, 0
    %p47 = por %p45, %p46
    %p48 = scmp.ne.s32.totalorder %s34, %s35
    %p49 = scmp.eq.s32.totalorder %s15, 1
    %p50 = por %p48, %p49
    %p52 = scmp.ne.s32.totalorder %s35, %s51
    %p53 = scmp.eq.s32.totalorder %s15, 0
    %p54 = por %p52, %p53
    %s56 = sadd.s32 %s55, 1
    %p59 = scmp.eq.s32.totalorder %s9, 1
    %p60 = scmp.ne.s32.totalorder %s55, %s57
    %p61 = scmp.eq.s32.totalorder %s9, 0
    %p62 = por %p60, %p61
    %p63 = scmp.ne.s32.totalorder %s55, %s57
    %p64 = scmp.eq.s32.totalorder %s14, 1
    %p65 = por %p63, %p64
    %p66 = scmp.ne.s32.totalorder %s57, %s58
    %p67 = scmp.eq.s32.totalorder %s14, 0
    %p68 = por %p66, %p67
    %p69 = scmp.ne.s32.totalorder %s57, %s58
    %p70 = scmp.eq.s32.totalorder %s15, 1
    %p71 = por %p69, %p70
    %p73 = scmp.ne.s32.totalorder %s58, %s72
    %p74 = scmp.eq.s32.totalorder %s15, 0
    %p75 = por %p73, %p74
    %s77 = sadd.s32 %s76, 1
    %p80 = scmp.eq.s32.totalorder %s9, 1
    %p81 = scmp.ne.s32.totalorder %s76, %s78
    %p82 = scmp.eq.s32.totalorder %s9, 0
    %p83 = por %p81, %p82
    %p84 = scmp.ne.s32.totalorder %s76, %s78
    %p85 = scmp.eq.s32.totalorder %s14, 1
    %p86 = por %p84, %p85
    %p87 = scmp.ne.s32.totalorder %s78, %s79
    %p88 = scmp.eq.s32.totalorder %s14, 0
    %p89 = por %p87, %p88
    %p90 = scmp.ne.s32.totalorder %s78, %s79
    %p91 = scmp.eq.s32.totalorder %s15, 1
    %p92 = por %p90, %p91
    %p94 = scmp.ne.s32.totalorder %s79, %s93
    %p95 = scmp.eq.s32.totalorder %s15, 0
    %p96 = por %p94, %p95
    %s97 = ssub.s32 %s16, %s28
    %s98 = ssub.s32 %s17, %s24
    %s99 = sor.u32 %s97, %s98
    %p100 = scmp.eq.s32.totalorder %s99, 0
    %s102 = sadd.s32 %s101, 1
    %s103 = scalar_select %p100, %s101, %s102
    %p106 = pneg %p100
    %p107 = scmp.eq.s32.totalorder %s9, 1
    %p108 = por %p106, %p107
    %p109 = scmp.ne.s32.totalorder %s101, %s104
    %p110 = scmp.eq.s32.totalorder %s9, 0
    %p111 = por %p109, %p110
    %p112 = scmp.ne.s32.totalorder %s101, %s104
    %p113 = scmp.eq.s32.totalorder %s14, 1
    %p114 = por %p112, %p113
    %p115 = scmp.ne.s32.totalorder %s104, %s105
    %p116 = scmp.eq.s32.totalorder %s14, 0
    %p117 = por %p115, %p116
    %p118 = scmp.ne.s32.totalorder %s104, %s105
    %p119 = scmp.eq.s32.totalorder %s15, 1
    %p120 = por %p118, %p119
    %p122 = scmp.ne.s32.totalorder %s105, %s121
    %p123 = scmp.eq.s32.totalorder %s15, 0
    %p124 = por %p122, %p123
    %p125 = scmp.le.s32.totalorder 1, %s9
    %p126 = scmp.lt.s32.totalorder %s9, 3
    %p127 = pnand %p125, %p126
    %p128 = pneg %p127
    // Predicated region
    $region9: #{tpu_custom_call.1} parent=5 // pred_check
      _
    $region10: #{tpu_custom_call.1} parent=5 // pred_check_branch
      %130 = sbr.rel (%p127) target = $region12
    $region11: #{tpu_custom_call.1} parent=5 // pred_region
      %s131 = ssub.s32 %s9, 1
      // Predicated region
      $region13: #{tpu_custom_call.1} parent=11 // pred_check
        %p132 = pneg %p68
      $region14: #{tpu_custom_call.1} parent=11 // pred_check_branch
        %134 = sbr.rel (%p132) target = $region16
      $region15: #{tpu_custom_call.1} parent=11 // pred_region
        _
      $region16: #{tpu_custom_call.1} parent=11 // pred_fallthru
        _
      // Predicated region
      $region17: #{tpu_custom_call.1} parent=11 // pred_check
        %p135 = pneg %p89
      $region18: #{tpu_custom_call.1} parent=11 // pred_check_branch
        %137 = sbr.rel (%p135) target = $region20
      $region19: #{tpu_custom_call.1} parent=11 // pred_region
        _
      $region20: #{tpu_custom_call.1} parent=11 // pred_fallthru
        _
    $region12: #{tpu_custom_call.1} parent=5 // pred_fallthru
      _
    %p138 = scmp.lt.s32.totalorder %s9, 2
    // Predicated region
    $region21: #{tpu_custom_call.1} parent=5 // pred_check
      %p139 = pneg %p138
    $region22: #{tpu_custom_call.1} parent=5 // pred_check_branch
      %141 = sbr.rel (%p139) target = $region24
    $region23: #{tpu_custom_call.1} parent=5 // pred_region
      // Predicated region
      $region25: #{tpu_custom_call.1} parent=23 // pred_check
        %p142 = pneg %p41
      $region26: #{tpu_custom_call.1} parent=23 // pred_check_branch
        %144 = sbr.rel (%p142) target = $region28
      $region27: #{tpu_custom_call.1} parent=23 // pred_region
        %p145 = scmp.lt.s32.totalorder %s16, 1
        %s146 = scalar_select %p145, %s16, 1
        %s147 = smul.addr %s146, 54
        %s148 = smul.addr %s147, 8
        %s149 = scalar_lea.vmem %s0, %s148
      $region28: #{tpu_custom_call.1} parent=23 // pred_fallthru
        _
    $region24: #{tpu_custom_call.1} parent=5 // pred_fallthru
      _
    %p150 = scmp.le.s32.totalorder 1, %s9
    %p151 = scmp.lt.s32.totalorder %s9, 3
    %p152 = pnand %p150, %p151
    %p153 = pneg %p152
    // Predicated region
    $region29: #{tpu_custom_call.1} parent=5 // pred_check
      _
    $region30: #{tpu_custom_call.1} parent=5 // pred_check_branch
      %155 = sbr.rel (%p152) target = $region32
    $region31: #{tpu_custom_call.1} parent=5 // pred_region
      %s156 = ssub.s32 %s9, 1
      %p157 = scmp.lt.s32.totalorder %s18, 1
      %s158 = scalar_select %p157, %s18, 1
      %s159 = smul.addr %s158, 54
      %s160 = smul.addr %s159, 8
      %s161 = scalar_lea.vmem %s0, %s160
      %p162 = pneg %p47
      %p163 = pneg %p44
      %p164 = pneg %p68
      %p165 = pneg %p65
      %p166 = pneg %p89
      %p167 = pneg %p86
      %p168 = pneg %p117
      %p169 = pneg %p114
      %s170 = smul.u32 16, %s19
      %p171 = scmp.lt.s32.totalorder %s18, 1
      %s172 = scalar_select %p171, %s18, 1
      %p173 = scmp.lt.s32.totalorder %s170, 15
      %s174 = scalar_select %p173, %s170, 15
      %s175 = smul.addr %s174, 2
      %s176 = smul.addr %s172, 128
      %s177 = sadd.s32 %s175, %s176
      %s178 = smul.addr %s177, 8
      %s179 = scalar_lea.vmem %s3, %s178
      %p180 = scmp.lt.s32.totalorder %s18, 1
      %s181 = scalar_select %p180, %s18, 1
      %s182 = smul.addr %s181, 54
      %s183 = smul.addr %s182, 8
      %s184 = scalar_lea.vmem %s0, %s183
      %s185 = smul.u32 16, %s19
      %p186 = scmp.lt.s32.totalorder %s18, 1
      %s187 = scalar_select %p186, %s18, 1
      %p188 = scmp.lt.s32.totalorder %s185, 15
      %s189 = scalar_select %p188, %s185, 15
      %s190 = smul.addr %s189, 2
      %s191 = smul.addr %s187, 128
      %s192 = sadd.s32 %s190, %s191
      %s193 = smul.addr %s192, 8
      %s194 = scalar_lea.vmem %s3, %s193
      %s195 = smul.u32 16, %s19
      %s196 = smul.u32 %s19, 16
      %v197 = vld [vmem:[%s2] sm:$0x1]
      %s198 = smul.u32 %s196, 24
      %s199 = scalar_lea.vmem %s184, %s198
      %v200 = vld [vmem:[%s199] sm:$0xff]
      %v201 = vld [vmem:[%s199 + $0x8] sm:$0xff]
      %v202 = vld [vmem:[%s199 + $0x18] sm:$0xff]
      %v203 = vld [vmem:[%s199 + $0x20] sm:$0xff]
      %v204 = vld [vmem:[%s199 + $0x30] sm:$0xff]
      %v205 = vld [vmem:[%s199 + $0x38] sm:$0xff]
      %v206 = vld [vmem:[%s199 + $0x48] sm:$0xff]
      %v207 = vld [vmem:[%s199 + $0x50] sm:$0xff]
      %v208 = vld [vmem:[%s199 + $0x60] sm:$0xff]
      %v209 = vld [vmem:[%s199 + $0x68] sm:$0xff]
      %v210 = vld [vmem:[%s199 + $0x78] sm:$0xff]
      %v211 = vld [vmem:[%s199 + $0x80] sm:$0xff]
      %v212 = vld [vmem:[%s199 + $0x90] sm:$0xff]
      %v213 = vld [vmem:[%s199 + $0x98] sm:$0xff]
      %v214 = vld [vmem:[%s199 + $0xa8] sm:$0xff]
      %v215 = vld [vmem:[%s199 + $0xb0] sm:$0xff]
      %v216 = vld [vmem:[%s199 + $0xc0] sm:$0xff]
      %v217 = vld [vmem:[%s199 + $0xc8] sm:$0xff]
      %v218 = vld [vmem:[%s199 + $0xd8] sm:$0xff]
      %v219 = vld [vmem:[%s199 + $0xe0] sm:$0xff]
      %v220 = vld [vmem:[%s199 + $0xf0] sm:$0xff]
      %v221 = vld [vmem:[%s199 + $0xf8] sm:$0xff]
      %v222 = vld [vmem:[%s199 + $0x108] sm:$0xff]
      %v223 = vld [vmem:[%s199 + $0x110] sm:$0xff]
      %v224 = vld [vmem:[%s199 + $0x120] sm:$0xff]
      %v225 = vld [vmem:[%s199 + $0x128] sm:$0xff]
      %v226 = vld [vmem:[%s199 + $0x138] sm:$0xff]
      %v227 = vld [vmem:[%s199 + $0x140] sm:$0xff]
      %v228 = vld [vmem:[%s199 + $0x150] sm:$0xff]
      %v229 = vld [vmem:[%s199 + $0x158] sm:$0xff]
      %v230 = vld [vmem:[%s199 + $0x168] sm:$0xff]
      %v231 = vld [vmem:[%s199 + $0x170] sm:$0xff]
      %v232 = vld [vmem:[%s199 + $0x1] sm:$0xff]
      %v233 = vld [vmem:[%s199 + $0x9] sm:$0xff]
      %v234 = vld [vmem:[%s199 + $0x19] sm:$0xff]
      %v235 = vld [vmem:[%s199 + $0x21] sm:$0xff]
      %v236 = vld [vmem:[%s199 + $0x31] sm:$0xff]
      %v237 = vld [vmem:[%s199 + $0x39] sm:$0xff]
      %v238 = vld [vmem:[%s199 + $0x49] sm:$0xff]
      %v239 = vld [vmem:[%s199 + $0x51] sm:$0xff]
      %v240 = vld [vmem:[%s199 + $0x61] sm:$0xff]
      %v241 = vld [vmem:[%s199 + $0x69] sm:$0xff]
      %v242 = vld [vmem:[%s199 + $0x79] sm:$0xff]
      %v243 = vld [vmem:[%s199 + $0x81] sm:$0xff]
      %v244 = vld [vmem:[%s199 + $0x91] sm:$0xff]
      %v245 = vld [vmem:[%s199 + $0x99] sm:$0xff]
      %v246 = vld [vmem:[%s199 + $0xa9] sm:$0xff]
      %v247 = vld [vmem:[%s199 + $0xb1] sm:$0xff]
      %v248 = vld [vmem:[%s199 + $0xc1] sm:$0xff]
      %v249 = vld [vmem:[%s199 + $0xc9] sm:$0xff]
      %v250 = vld [vmem:[%s199 + $0xd9] sm:$0xff]
      %v251 = vld [vmem:[%s199 + $0xe1] sm:$0xff]
      %v252 = vld [vmem:[%s199 + $0xf1] sm:$0xff]
      %v253 = vld [vmem:[%s199 + $0xf9] sm:$0xff]
      %v254 = vld [vmem:[%s199 + $0x109] sm:$0xff]
      %v255 = vld [vmem:[%s199 + $0x111] sm:$0xff]
      %v256 = vld [vmem:[%s199 + $0x121] sm:$0xff]
      %v257 = vld [vmem:[%s199 + $0x129] sm:$0xff]
      %v258 = vld [vmem:[%s199 + $0x139] sm:$0xff]
      %v259 = vld [vmem:[%s199 + $0x141] sm:$0xff]
      %v260 = vld [vmem:[%s199 + $0x151] sm:$0xff]
      %v261 = vld [vmem:[%s199 + $0x159] sm:$0xff]
      %v262 = vld [vmem:[%s199 + $0x169] sm:$0xff]
      %v263 = vld [vmem:[%s199 + $0x171] sm:$0xff]
      %v264 = vld [vmem:[%s199 + $0x2] sm:$0xff]
      %v265 = vld [vmem:[%s199 + $0xa] sm:$0xff]
      %v266 = vld [vmem:[%s199 + $0x1a] sm:$0xff]
      %v267 = vld [vmem:[%s199 + $0x22] sm:$0xff]
      %v268 = vld [vmem:[%s199 + $0x32] sm:$0xff]
      %v269 = vld [vmem:[%s199 + $0x3a] sm:$0xff]
      %v270 = vld [vmem:[%s199 + $0x4a] sm:$0xff]
      %v271 = vld [vmem:[%s199 + $0x52] sm:$0xff]
      %v272 = vld [vmem:[%s199 + $0x62] sm:$0xff]
      %v273 = vld [vmem:[%s199 + $0x6a] sm:$0xff]
      %v274 = vld [vmem:[%s199 + $0x7a] sm:$0xff]
      %v275 = vld [vmem:[%s199 + $0x82] sm:$0xff]
      %v276 = vld [vmem:[%s199 + $0x92] sm:$0xff]
      %v277 = vld [vmem:[%s199 + $0x9a] sm:$0xff]
      %v278 = vld [vmem:[%s199 + $0xaa] sm:$0xff]
      %v279 = vld [vmem:[%s199 + $0xb2] sm:$0xff]
      %v280 = vld [vmem:[%s199 + $0xc2] sm:$0xff]
      %v281 = vld [vmem:[%s199 + $0xca] sm:$0xff]
      %v282 = vld [vmem:[%s199 + $0xda] sm:$0xff]
      %v283 = vld [vmem:[%s199 + $0xe2] sm:$0xff]
      %v284 = vld [vmem:[%s199 + $0xf2] sm:$0xff]
      %v285 = vld [vmem:[%s199 + $0xfa] sm:$0xff]
      %v286 = vld [vmem:[%s199 + $0x10a] sm:$0xff]
      %v287 = vld [vmem:[%s199 + $0x112] sm:$0xff]
      %v288 = vld [vmem:[%s199 + $0x122] sm:$0xff]
      %v289 = vld [vmem:[%s199 + $0x12a] sm:$0xff]
      %v290 = vld [vmem:[%s199 + $0x13a] sm:$0xff]
      %v291 = vld [vmem:[%s199 + $0x142] sm:$0xff]
      %v292 = vld [vmem:[%s199 + $0x152] sm:$0xff]
      %v293 = vld [vmem:[%s199 + $0x15a] sm:$0xff]
      %v294 = vld [vmem:[%s199 + $0x16a] sm:$0xff]
      %v295 = vld [vmem:[%s199 + $0x172] sm:$0xff]
      %s296 = sadd.s32 %s196, 1
      %s297 = smul.u32 %s296, 24
      %s298 = scalar_lea.vmem %s184, %s297
      %v299 = vld [vmem:[%s298] sm:$0xff]
      %v300 = vld [vmem:[%s298 + $0x8] sm:$0xff]
      %v301 = vld [vmem:[%s298 + $0x18] sm:$0xff]
      %v302 = vld [vmem:[%s298 + $0x20] sm:$0xff]
      %v303 = vld [vmem:[%s298 + $0x30] sm:$0xff]
      %v304 = vld [vmem:[%s298 + $0x38] sm:$0xff]
      %v305 = vld [vmem:[%s298 + $0x48] sm:$0xff]
      %v306 = vld [vmem:[%s298 + $0x50] sm:$0xff]
      %v307 = vld [vmem:[%s298 + $0x60] sm:$0xff]
      %v308 = vld [vmem:[%s298 + $0x68] sm:$0xff]
      %v309 = vld [vmem:[%s298 + $0x78] sm:$0xff]
      %v310 = vld [vmem:[%s298 + $0x80] sm:$0xff]
      %v311 = vld [vmem:[%s298 + $0x90] sm:$0xff]
      %v312 = vld [vmem:[%s298 + $0x98] sm:$0xff]
      %v313 = vld [vmem:[%s298 + $0xa8] sm:$0xff]
      %v314 = vld [vmem:[%s298 + $0xb0] sm:$0xff]
      %v315 = vld [vmem:[%s298 + $0xc0] sm:$0xff]
      %v316 = vld [vmem:[%s298 + $0xc8] sm:$0xff]
      %v317 = vld [vmem:[%s298 + $0xd8] sm:$0xff]
      %v318 = vld [vmem:[%s298 + $0xe0] sm:$0xff]
      %v319 = vld [vmem:[%s298 + $0xf0] sm:$0xff]
      %v320 = vld [vmem:[%s298 + $0xf8] sm:$0xff]
      %v321 = vld [vmem:[%s298 + $0x108] sm:$0xff]
      %v322 = vld [vmem:[%s298 + $0x110] sm:$0xff]
      %v323 = vld [vmem:[%s298 + $0x120] sm:$0xff]
      %v324 = vld [vmem:[%s298 + $0x128] sm:$0xff]
      %v325 = vld [vmem:[%s298 + $0x138] sm:$0xff]
      %v326 = vld [vmem:[%s298 + $0x140] sm:$0xff]
      %v327 = vld [vmem:[%s298 + $0x150] sm:$0xff]
      %v328 = vld [vmem:[%s298 + $0x158] sm:$0xff]
      %v329 = vld [vmem:[%s298 + $0x168] sm:$0xff]
      %v330 = vld [vmem:[%s298 + $0x170] sm:$0xff]
      %v331 = vld [vmem:[%s298 + $0x1] sm:$0xff]
      %v332 = vld [vmem:[%s298 + $0x9] sm:$0xff]
      %v333 = vld [vmem:[%s298 + $0x19] sm:$0xff]
      %v334 = vld [vmem:[%s298 + $0x21] sm:$0xff]
      %v335 = vld [vmem:[%s298 + $0x31] sm:$0xff]
      %v336 = vld [vmem:[%s298 + $0x39] sm:$0xff]
      %v337 = vld [vmem:[%s298 + $0x49] sm:$0xff]
      %v338 = vld [vmem:[%s298 + $0x51] sm:$0xff]
      %v339 = vld [vmem:[%s298 + $0x61] sm:$0xff]
      %v340 = vld [vmem:[%s298 + $0x69] sm:$0xff]
      %v341 = vld [vmem:[%s298 + $0x79] sm:$0xff]
      %v342 = vld [vmem:[%s298 + $0x81] sm:$0xff]
      %v343 = vld [vmem:[%s298 + $0x91] sm:$0xff]
      %v344 = vld [vmem:[%s298 + $0x99] sm:$0xff]
      %v345 = vld [vmem:[%s298 + $0xa9] sm:$0xff]
      %v346 = vld [vmem:[%s298 + $0xb1] sm:$0xff]
      %v347 = vld [vmem:[%s298 + $0xc1] sm:$0xff]
      %v348 = vld [vmem:[%s298 + $0xc9] sm:$0xff]
      %v349 = vld [vmem:[%s298 + $0xd9] sm:$0xff]
      %v350 = vld [vmem:[%s298 + $0xe1] sm:$0xff]
      %v351 = vld [vmem:[%s298 + $0xf1] sm:$0xff]
      %v352 = vld [vmem:[%s298 + $0xf9] sm:$0xff]
      %v353 = vld [vmem:[%s298 + $0x109] sm:$0xff]
      %v354 = vld [vmem:[%s298 + $0x111] sm:$0xff]
      %v355 = vld [vmem:[%s298 + $0x121] sm:$0xff]
      %v356 = vld [vmem:[%s298 + $0x129] sm:$0xff]
      %v357 = vld [vmem:[%s298 + $0x139] sm:$0xff]
      %v358 = vld [vmem:[%s298 + $0x141] sm:$0xff]
      %v359 = vld [vmem:[%s298 + $0x151] sm:$0xff]
      %v360 = vld [vmem:[%s298 + $0x159] sm:$0xff]
      %v361 = vld [vmem:[%s298 + $0x169] sm:$0xff]
      %v362 = vld [vmem:[%s298 + $0x171] sm:$0xff]
      %v363 = vld [vmem:[%s298 + $0x2] sm:$0xff]
      %v364 = vld [vmem:[%s298 + $0xa] sm:$0xff]
      %v365 = vld [vmem:[%s298 + $0x1a] sm:$0xff]
      %v366 = vld [vmem:[%s298 + $0x22] sm:$0xff]
      %v367 = vld [vmem:[%s298 + $0x32] sm:$0xff]
      %v368 = vld [vmem:[%s298 + $0x3a] sm:$0xff]
      %v369 = vld [vmem:[%s298 + $0x4a] sm:$0xff]
      %v370 = vld [vmem:[%s298 + $0x52] sm:$0xff]
      %v371 = vld [vmem:[%s298 + $0x62] sm:$0xff]
      %v372 = vld [vmem:[%s298 + $0x6a] sm:$0xff]
      %v373 = vld [vmem:[%s298 + $0x7a] sm:$0xff]
      %v374 = vld [vmem:[%s298 + $0x82] sm:$0xff]
      %v375 = vld [vmem:[%s298 + $0x92] sm:$0xff]
      %v376 = vld [vmem:[%s298 + $0x9a] sm:$0xff]
      %v377 = vld [vmem:[%s298 + $0xaa] sm:$0xff]
      %v378 = vld [vmem:[%s298 + $0xb2] sm:$0xff]
      %v379 = vld [vmem:[%s298 + $0xc2] sm:$0xff]
      %v380 = vld [vmem:[%s298 + $0xca] sm:$0xff]
      %v381 = vld [vmem:[%s298 + $0xda] sm:$0xff]
      %v382 = vld [vmem:[%s298 + $0xe2] sm:$0xff]
      %v383 = vld [vmem:[%s298 + $0xf2] sm:$0xff]
      %v384 = vld [vmem:[%s298 + $0xfa] sm:$0xff]
      %v385 = vld [vmem:[%s298 + $0x10a] sm:$0xff]
      %v386 = vld [vmem:[%s298 + $0x112] sm:$0xff]
      %v387 = vld [vmem:[%s298 + $0x122] sm:$0xff]
      %v388 = vld [vmem:[%s298 + $0x12a] sm:$0xff]
      %v389 = vld [vmem:[%s298 + $0x13a] sm:$0xff]
      %v390 = vld [vmem:[%s298 + $0x142] sm:$0xff]
      %v391 = vld [vmem:[%s298 + $0x152] sm:$0xff]
      %v392 = vld [vmem:[%s298 + $0x15a] sm:$0xff]
      %v393 = vld [vmem:[%s298 + $0x16a] sm:$0xff]
      %v394 = vld [vmem:[%s298 + $0x172] sm:$0xff]
      %s395 = sadd.s32 %s196, 2
      %s396 = smul.u32 %s395, 24
      %s397 = scalar_lea.vmem %s184, %s396
      %v398 = vld [vmem:[%s397] sm:$0xff]
      %v399 = vld [vmem:[%s397 + $0x8] sm:$0xff]
      %v400 = vld [vmem:[%s397 + $0x18] sm:$0xff]
      %v401 = vld [vmem:[%s397 + $0x20] sm:$0xff]
      %v402 = vld [vmem:[%s397 + $0x30] sm:$0xff]
      %v403 = vld [vmem:[%s397 + $0x38] sm:$0xff]
      %v404 = vld [vmem:[%s397 + $0x48] sm:$0xff]
      %v405 = vld [vmem:[%s397 + $0x50] sm:$0xff]
      %v406 = vld [vmem:[%s397 + $0x60] sm:$0xff]
      %v407 = vld [vmem:[%s397 + $0x68] sm:$0xff]
      %v408 = vld [vmem:[%s397 + $0x78] sm:$0xff]
      %v409 = vld [vmem:[%s397 + $0x80] sm:$0xff]
      %v410 = vld [vmem:[%s397 + $0x90] sm:$0xff]
      %v411 = vld [vmem:[%s397 + $0x98] sm:$0xff]
      %v412 = vld [vmem:[%s397 + $0xa8] sm:$0xff]
      %v413 = vld [vmem:[%s397 + $0xb0] sm:$0xff]
      %v414 = vld [vmem:[%s397 + $0xc0] sm:$0xff]
      %v415 = vld [vmem:[%s397 + $0xc8] sm:$0xff]
      %v416 = vld [vmem:[%s397 + $0xd8] sm:$0xff]
      %v417 = vld [vmem:[%s397 + $0xe0] sm:$0xff]
      %v418 = vld [vmem:[%s397 + $0xf0] sm:$0xff]
      %v419 = vld [vmem:[%s397 + $0xf8] sm:$0xff]
      %v420 = vld [vmem:[%s397 + $0x108] sm:$0xff]
      %v421 = vld [vmem:[%s397 + $0x110] sm:$0xff]
      %v422 = vld [vmem:[%s397 + $0x120] sm:$0xff]
      %v423 = vld [vmem:[%s397 + $0x128] sm:$0xff]
      %v424 = vld [vmem:[%s397 + $0x138] sm:$0xff]
      %v425 = vld [vmem:[%s397 + $0x140] sm:$0xff]
      %v426 = vld [vmem:[%s397 + $0x150] sm:$0xff]
      %v427 = vld [vmem:[%s397 + $0x158] sm:$0xff]
      %v428 = vld [vmem:[%s397 + $0x168] sm:$0xff]
      %v429 = vld [vmem:[%s397 + $0x170] sm:$0xff]
      %v430 = vld [vmem:[%s397 + $0x1] sm:$0xff]
      %v431 = vld [vmem:[%s397 + $0x9] sm:$0xff]
      %v432 = vld [vmem:[%s397 + $0x19] sm:$0xff]
      %v433 = vld [vmem:[%s397 + $0x21] sm:$0xff]
      %v434 = vld [vmem:[%s397 + $0x31] sm:$0xff]
      %v435 = vld [vmem:[%s397 + $0x39] sm:$0xff]
      %v436 = vld [vmem:[%s397 + $0x49] sm:$0xff]
      %v437 = vld [vmem:[%s397 + $0x51] sm:$0xff]
      %v438 = vld [vmem:[%s397 + $0x61] sm:$0xff]
      %v439 = vld [vmem:[%s397 + $0x69] sm:$0xff]
      %v440 = vld [vmem:[%s397 + $0x79] sm:$0xff]
      %v441 = vld [vmem:[%s397 + $0x81] sm:$0xff]
      %v442 = vld [vmem:[%s397 + $0x91] sm:$0xff]
      %v443 = vld [vmem:[%s397 + $0x99] sm:$0xff]
      %v444 = vld [vmem:[%s397 + $0xa9] sm:$0xff]
      %v445 = vld [vmem:[%s397 + $0xb1] sm:$0xff]
      %v446 = vld [vmem:[%s397 + $0xc1] sm:$0xff]
      %v447 = vld [vmem:[%s397 + $0xc9] sm:$0xff]
      %v448 = vld [vmem:[%s397 + $0xd9] sm:$0xff]
      %v449 = vld [vmem:[%s397 + $0xe1] sm:$0xff]
      %v450 = vld [vmem:[%s397 + $0xf1] sm:$0xff]
      %v451 = vld [vmem:[%s397 + $0xf9] sm:$0xff]
      %v452 = vld [vmem:[%s397 + $0x109] sm:$0xff]
      %v453 = vld [vmem:[%s397 + $0x111] sm:$0xff]
      %v454 = vld [vmem:[%s397 + $0x121] sm:$0xff]
      %v455 = vld [vmem:[%s397 + $0x129] sm:$0xff]
      %v456 = vld [vmem:[%s397 + $0x139] sm:$0xff]
      %v457 = vld [vmem:[%s397 + $0x141] sm:$0xff]
      %v458 = vld [vmem:[%s397 + $0x151] sm:$0xff]
      %v459 = vld [vmem:[%s397 + $0x159] sm:$0xff]
      %v460 = vld [vmem:[%s397 + $0x169] sm:$0xff]
      %v461 = vld [vmem:[%s397 + $0x171] sm:$0xff]
      %v462 = vld [vmem:[%s397 + $0x2] sm:$0xff]
      %v463 = vld [vmem:[%s397 + $0xa] sm:$0xff]
      %v464 = vld [vmem:[%s397 + $0x1a] sm:$0xff]
      %v465 = vld [vmem:[%s397 + $0x22] sm:$0xff]
      %v466 = vld [vmem:[%s397 + $0x32] sm:$0xff]
      %v467 = vld [vmem:[%s397 + $0x3a] sm:$0xff]
      %v468 = vld [vmem:[%s397 + $0x4a] sm:$0xff]
      %v469 = vld [vmem:[%s397 + $0x52] sm:$0xff]
      %v470 = vld [vmem:[%s397 + $0x62] sm:$0xff]
      %v471 = vld [vmem:[%s397 + $0x6a] sm:$0xff]
      %v472 = vld [vmem:[%s397 + $0x7a] sm:$0xff]
      %v473 = vld [vmem:[%s397 + $0x82] sm:$0xff]
      %v474 = vld [vmem:[%s397 + $0x92] sm:$0xff]
      %v475 = vld [vmem:[%s397 + $0x9a] sm:$0xff]
      %v476 = vld [vmem:[%s397 + $0xaa] sm:$0xff]
      %v477 = vld [vmem:[%s397 + $0xb2] sm:$0xff]
      %v478 = vld [vmem:[%s397 + $0xc2] sm:$0xff]
      %v479 = vld [vmem:[%s397 + $0xca] sm:$0xff]
      %v480 = vld [vmem:[%s397 + $0xda] sm:$0xff]
      %v481 = vld [vmem:[%s397 + $0xe2] sm:$0xff]
      %v482 = vld [vmem:[%s397 + $0xf2] sm:$0xff]
      %v483 = vld [vmem:[%s397 + $0xfa] sm:$0xff]
      %v484 = vld [vmem:[%s397 + $0x10a] sm:$0xff]
      %v485 = vld [vmem:[%s397 + $0x112] sm:$0xff]
      %v486 = vld [vmem:[%s397 + $0x122] sm:$0xff]
      %v487 = vld [vmem:[%s397 + $0x12a] sm:$0xff]
      %v488 = vld [vmem:[%s397 + $0x13a] sm:$0xff]
      %v489 = vld [vmem:[%s397 + $0x142] sm:$0xff]
      %v490 = vld [vmem:[%s397 + $0x152] sm:$0xff]
      %v491 = vld [vmem:[%s397 + $0x15a] sm:$0xff]
      %v492 = vld [vmem:[%s397 + $0x16a] sm:$0xff]
      %v493 = vld [vmem:[%s397 + $0x172] sm:$0xff]
      %526 = vrot.lane.b32.xlu0 %v232, 4
      %v527 = vpop.permute.xlu0 %526
      %528 = vrot.lane.b32.xlu0 %v233, 4
      %v529 = vpop.permute.xlu0 %528
      %530 = vrot.lane.b32.xlu0 %v234, 4
      %v531 = vpop.permute.xlu0 %530
      %532 = vrot.lane.b32.xlu0 %v235, 4
      %v533 = vpop.permute.xlu0 %532
      %534 = vrot.lane.b32.xlu0 %v236, 4
      %v535 = vpop.permute.xlu0 %534
      %536 = vrot.lane.b32.xlu0 %v237, 4
      %v537 = vpop.permute.xlu0 %536
      %538 = vrot.lane.b32.xlu0 %v238, 4
      %v539 = vpop.permute.xlu0 %538
      %540 = vrot.lane.b32.xlu0 %v239, 4
      %v541 = vpop.permute.xlu0 %540
      %542 = vrot.lane.b32.xlu0 %v240, 4
      %v543 = vpop.permute.xlu0 %542
      %544 = vrot.lane.b32.xlu0 %v241, 4
      %v545 = vpop.permute.xlu0 %544
      %546 = vrot.lane.b32.xlu0 %v242, 4
      %v547 = vpop.permute.xlu0 %546
      %548 = vrot.lane.b32.xlu0 %v243, 4
      %v549 = vpop.permute.xlu0 %548
      %550 = vrot.lane.b32.xlu0 %v244, 4
      %v551 = vpop.permute.xlu0 %550
      %552 = vrot.lane.b32.xlu0 %v245, 4
      %v553 = vpop.permute.xlu0 %552
      %554 = vrot.lane.b32.xlu0 %v246, 4
      %v555 = vpop.permute.xlu0 %554
      %556 = vrot.lane.b32.xlu0 %v247, 4
      %v557 = vpop.permute.xlu0 %556
      %558 = vrot.lane.b32.xlu0 %v248, 4
      %v559 = vpop.permute.xlu0 %558
      %560 = vrot.lane.b32.xlu0 %v249, 4
      %v561 = vpop.permute.xlu0 %560
      %562 = vrot.lane.b32.xlu0 %v250, 4
      %v563 = vpop.permute.xlu0 %562
      %564 = vrot.lane.b32.xlu0 %v251, 4
      %v565 = vpop.permute.xlu0 %564
      %566 = vrot.lane.b32.xlu0 %v252, 4
      %v567 = vpop.permute.xlu0 %566
      %568 = vrot.lane.b32.xlu0 %v253, 4
      %v569 = vpop.permute.xlu0 %568
      %570 = vrot.lane.b32.xlu0 %v254, 4
      %v571 = vpop.permute.xlu0 %570
      %572 = vrot.lane.b32.xlu0 %v255, 4
      %v573 = vpop.permute.xlu0 %572
      %574 = vrot.lane.b32.xlu0 %v256, 4
      %v575 = vpop.permute.xlu0 %574
      %576 = vrot.lane.b32.xlu0 %v257, 4
      %v577 = vpop.permute.xlu0 %576
      %578 = vrot.lane.b32.xlu0 %v258, 4
      %v579 = vpop.permute.xlu0 %578
      %580 = vrot.lane.b32.xlu0 %v259, 4
      %v581 = vpop.permute.xlu0 %580
      %582 = vrot.lane.b32.xlu0 %v260, 4
      %v583 = vpop.permute.xlu0 %582
      %584 = vrot.lane.b32.xlu0 %v261, 4
      %v585 = vpop.permute.xlu0 %584
      %586 = vrot.lane.b32.xlu0 %v262, 4
      %v587 = vpop.permute.xlu0 %586
      %588 = vrot.lane.b32.xlu0 %v263, 4
      %v589 = vpop.permute.xlu0 %588
      %654 = vrot.lane.b32.xlu0 %v264, 8
      %v655 = vpop.permute.xlu0 %654
      %656 = vrot.lane.b32.xlu0 %v265, 8
      %v657 = vpop.permute.xlu0 %656
      %658 = vrot.lane.b32.xlu0 %v266, 8
      %v659 = vpop.permute.xlu0 %658
      %660 = vrot.lane.b32.xlu0 %v267, 8
      %v661 = vpop.permute.xlu0 %660
      %662 = vrot.lane.b32.xlu0 %v268, 8
      %v663 = vpop.permute.xlu0 %662
      %664 = vrot.lane.b32.xlu0 %v269, 8
      %v665 = vpop.permute.xlu0 %664
      %666 = vrot.lane.b32.xlu0 %v270, 8
      %v667 = vpop.permute.xlu0 %666
      %668 = vrot.lane.b32.xlu0 %v271, 8
      %v669 = vpop.permute.xlu0 %668
      %670 = vrot.lane.b32.xlu0 %v272, 8
      %v671 = vpop.permute.xlu0 %670
      %672 = vrot.lane.b32.xlu0 %v273, 8
      %v673 = vpop.permute.xlu0 %672
      %674 = vrot.lane.b32.xlu0 %v274, 8
      %v675 = vpop.permute.xlu0 %674
      %676 = vrot.lane.b32.xlu0 %v275, 8
      %v677 = vpop.permute.xlu0 %676
      %678 = vrot.lane.b32.xlu0 %v276, 8
      %v679 = vpop.permute.xlu0 %678
      %680 = vrot.lane.b32.xlu0 %v277, 8
      %v681 = vpop.permute.xlu0 %680
      %682 = vrot.lane.b32.xlu0 %v278, 8
      %v683 = vpop.permute.xlu0 %682
      %684 = vrot.lane.b32.xlu0 %v279, 8
      %v685 = vpop.permute.xlu0 %684
      %686 = vrot.lane.b32.xlu0 %v280, 8
      %v687 = vpop.permute.xlu0 %686
      %688 = vrot.lane.b32.xlu0 %v281, 8
      %v689 = vpop.permute.xlu0 %688
      %690 = vrot.lane.b32.xlu0 %v282, 8
      %v691 = vpop.permute.xlu0 %690
      %692 = vrot.lane.b32.xlu0 %v283, 8
      %v693 = vpop.permute.xlu0 %692
      %694 = vrot.lane.b32.xlu0 %v284, 8
      %v695 = vpop.permute.xlu0 %694
      %696 = vrot.lane.b32.xlu0 %v285, 8
      %v697 = vpop.permute.xlu0 %696
      %698 = vrot.lane.b32.xlu0 %v286, 8
      %v699 = vpop.permute.xlu0 %698
      %700 = vrot.lane.b32.xlu0 %v287, 8
      %v701 = vpop.permute.xlu0 %700
      %702 = vrot.lane.b32.xlu0 %v288, 8
      %v703 = vpop.permute.xlu0 %702
      %704 = vrot.lane.b32.xlu0 %v289, 8
      %v705 = vpop.permute.xlu0 %704
      %706 = vrot.lane.b32.xlu0 %v290, 8
      %v707 = vpop.permute.xlu0 %706
      %708 = vrot.lane.b32.xlu0 %v291, 8
      %v709 = vpop.permute.xlu0 %708
      %710 = vrot.lane.b32.xlu0 %v292, 8
      %v711 = vpop.permute.xlu0 %710
      %712 = vrot.lane.b32.xlu0 %v293, 8
      %v713 = vpop.permute.xlu0 %712
      %714 = vrot.lane.b32.xlu0 %v294, 8
      %v715 = vpop.permute.xlu0 %714
      %716 = vrot.lane.b32.xlu0 %v295, 8
      %v717 = vpop.permute.xlu0 %716
      %782 = vrot.lane.b32.xlu0 %v299, 12
      %v783 = vpop.permute.xlu0 %782
      %784 = vrot.lane.b32.xlu0 %v300, 12
      %v785 = vpop.permute.xlu0 %784
      %786 = vrot.lane.b32.xlu0 %v301, 12
      %v787 = vpop.permute.xlu0 %786
      %788 = vrot.lane.b32.xlu0 %v302, 12
      %v789 = vpop.permute.xlu0 %788
      %790 = vrot.lane.b32.xlu0 %v303, 12
      %v791 = vpop.permute.xlu0 %790
      %792 = vrot.lane.b32.xlu0 %v304, 12
      %v793 = vpop.permute.xlu0 %792
      %794 = vrot.lane.b32.xlu0 %v305, 12
      %v795 = vpop.permute.xlu0 %794
      %796 = vrot.lane.b32.xlu0 %v306, 12
      %v797 = vpop.permute.xlu0 %796
      %798 = vrot.lane.b32.xlu0 %v307, 12
      %v799 = vpop.permute.xlu0 %798
      %800 = vrot.lane.b32.xlu0 %v308, 12
      %v801 = vpop.permute.xlu0 %800
      %802 = vrot.lane.b32.xlu0 %v309, 12
      %v803 = vpop.permute.xlu0 %802
      %804 = vrot.lane.b32.xlu0 %v310, 12
      %v805 = vpop.permute.xlu0 %804
      %806 = vrot.lane.b32.xlu0 %v311, 12
      %v807 = vpop.permute.xlu0 %806
      %808 = vrot.lane.b32.xlu0 %v312, 12
      %v809 = vpop.permute.xlu0 %808
      %810 = vrot.lane.b32.xlu0 %v313, 12
      %v811 = vpop.permute.xlu0 %810
      %812 = vrot.lane.b32.xlu0 %v314, 12
      %v813 = vpop.permute.xlu0 %812
      %814 = vrot.lane.b32.xlu0 %v315, 12
      %v815 = vpop.permute.xlu0 %814
      %816 = vrot.lane.b32.xlu0 %v316, 12
      %v817 = vpop.permute.xlu0 %816
      %818 = vrot.lane.b32.xlu0 %v317, 12
      %v819 = vpop.permute.xlu0 %818
      %820 = vrot.lane.b32.xlu0 %v318, 12
      %v821 = vpop.permute.xlu0 %820
      %822 = vrot.lane.b32.xlu0 %v319, 12
      %v823 = vpop.permute.xlu0 %822
      %824 = vrot.lane.b32.xlu0 %v320, 12
      %v825 = vpop.permute.xlu0 %824
      %826 = vrot.lane.b32.xlu0 %v321, 12
      %v827 = vpop.permute.xlu0 %826
      %828 = vrot.lane.b32.xlu0 %v322, 12
      %v829 = vpop.permute.xlu0 %828
      %830 = vrot.lane.b32.xlu0 %v323, 12
      %v831 = vpop.permute.xlu0 %830
      %832 = vrot.lane.b32.xlu0 %v324, 12
      %v833 = vpop.permute.xlu0 %832
      %834 = vrot.lane.b32.xlu0 %v325, 12
      %v835 = vpop.permute.xlu0 %834
      %836 = vrot.lane.b32.xlu0 %v326, 12
      %v837 = vpop.permute.xlu0 %836
      %838 = vrot.lane.b32.xlu0 %v327, 12
      %v839 = vpop.permute.xlu0 %838
      %840 = vrot.lane.b32.xlu0 %v328, 12
      %v841 = vpop.permute.xlu0 %840
      %842 = vrot.lane.b32.xlu0 %v329, 12
      %v843 = vpop.permute.xlu0 %842
      %844 = vrot.lane.b32.xlu0 %v330, 12
      %v845 = vpop.permute.xlu0 %844
      %910 = vrot.lane.b32.xlu0 %v331, 16
      %v911 = vpop.permute.xlu0 %910
      %912 = vrot.lane.b32.xlu0 %v332, 16
      %v913 = vpop.permute.xlu0 %912
      %914 = vrot.lane.b32.xlu0 %v333, 16
      %v915 = vpop.permute.xlu0 %914
      %916 = vrot.lane.b32.xlu0 %v334, 16
      %v917 = vpop.permute.xlu0 %916
      %918 = vrot.lane.b32.xlu0 %v335, 16
      %v919 = vpop.permute.xlu0 %918
      %920 = vrot.lane.b32.xlu0 %v336, 16
      %v921 = vpop.permute.xlu0 %920
      %922 = vrot.lane.b32.xlu0 %v337, 16
      %v923 = vpop.permute.xlu0 %922
      %924 = vrot.lane.b32.xlu0 %v338, 16
      %v925 = vpop.permute.xlu0 %924
      %926 = vrot.lane.b32.xlu0 %v339, 16
      %v927 = vpop.permute.xlu0 %926
      %928 = vrot.lane.b32.xlu0 %v340, 16
      %v929 = vpop.permute.xlu0 %928
      %930 = vrot.lane.b32.xlu0 %v341, 16
      %v931 = vpop.permute.xlu0 %930
      %932 = vrot.lane.b32.xlu0 %v342, 16
      %v933 = vpop.permute.xlu0 %932
      %934 = vrot.lane.b32.xlu0 %v343, 16
      %v935 = vpop.permute.xlu0 %934
      %936 = vrot.lane.b32.xlu0 %v344, 16
      %v937 = vpop.permute.xlu0 %936
      %938 = vrot.lane.b32.xlu0 %v345, 16
      %v939 = vpop.permute.xlu0 %938
      %940 = vrot.lane.b32.xlu0 %v346, 16
      %v941 = vpop.permute.xlu0 %940
      %942 = vrot.lane.b32.xlu0 %v347, 16
      %v943 = vpop.permute.xlu0 %942
      %944 = vrot.lane.b32.xlu0 %v348, 16
      %v945 = vpop.permute.xlu0 %944
      %946 = vrot.lane.b32.xlu0 %v349, 16
      %v947 = vpop.permute.xlu0 %946
      %948 = vrot.lane.b32.xlu0 %v350, 16
      %v949 = vpop.permute.xlu0 %948
      %950 = vrot.lane.b32.xlu0 %v351, 16
      %v951 = vpop.permute.xlu0 %950
      %952 = vrot.lane.b32.xlu0 %v352, 16
      %v953 = vpop.permute.xlu0 %952
      %954 = vrot.lane.b32.xlu0 %v353, 16
      %v955 = vpop.permute.xlu0 %954
      %956 = vrot.lane.b32.xlu0 %v354, 16
      %v957 = vpop.permute.xlu0 %956
      %958 = vrot.lane.b32.xlu0 %v355, 16
      %v959 = vpop.permute.xlu0 %958
      %960 = vrot.lane.b32.xlu0 %v356, 16
      %v961 = vpop.permute.xlu0 %960
      %962 = vrot.lane.b32.xlu0 %v357, 16
      %v963 = vpop.permute.xlu0 %962
      %964 = vrot.lane.b32.xlu0 %v358, 16
      %v965 = vpop.permute.xlu0 %964
      %966 = vrot.lane.b32.xlu0 %v359, 16
      %v967 = vpop.permute.xlu0 %966
      %968 = vrot.lane.b32.xlu0 %v360, 16
      %v969 = vpop.permute.xlu0 %968
      %970 = vrot.lane.b32.xlu0 %v361, 16
      %v971 = vpop.permute.xlu0 %970
      %972 = vrot.lane.b32.xlu0 %v362, 16
      %v973 = vpop.permute.xlu0 %972
      %1038 = vrot.lane.b32.xlu0 %v363, 20
      %v1039 = vpop.permute.xlu0 %1038
      %1040 = vrot.lane.b32.xlu0 %v364, 20
      %v1041 = vpop.permute.xlu0 %1040
      %1042 = vrot.lane.b32.xlu0 %v365, 20
      %v1043 = vpop.permute.xlu0 %1042
      %1044 = vrot.lane.b32.xlu0 %v366, 20
      %v1045 = vpop.permute.xlu0 %1044
      %1046 = vrot.lane.b32.xlu0 %v367, 20
      %v1047 = vpop.permute.xlu0 %1046
      %1048 = vrot.lane.b32.xlu0 %v368, 20
      %v1049 = vpop.permute.xlu0 %1048
      %1050 = vrot.lane.b32.xlu0 %v369, 20
      %v1051 = vpop.permute.xlu0 %1050
      %1052 = vrot.lane.b32.xlu0 %v370, 20
      %v1053 = vpop.permute.xlu0 %1052
      %1054 = vrot.lane.b32.xlu0 %v371, 20
      %v1055 = vpop.permute.xlu0 %1054
      %1056 = vrot.lane.b32.xlu0 %v372, 20
      %v1057 = vpop.permute.xlu0 %1056
      %1058 = vrot.lane.b32.xlu0 %v373, 20
      %v1059 = vpop.permute.xlu0 %1058
      %1060 = vrot.lane.b32.xlu0 %v374, 20
      %v1061 = vpop.permute.xlu0 %1060
      %1062 = vrot.lane.b32.xlu0 %v375, 20
      %v1063 = vpop.permute.xlu0 %1062
      %1064 = vrot.lane.b32.xlu0 %v376, 20
      %v1065 = vpop.permute.xlu0 %1064
      %1066 = vrot.lane.b32.xlu0 %v377, 20
      %v1067 = vpop.permute.xlu0 %1066
      %1068 = vrot.lane.b32.xlu0 %v378, 20
      %v1069 = vpop.permute.xlu0 %1068
      %1070 = vrot.lane.b32.xlu0 %v379, 20
      %v1071 = vpop.permute.xlu0 %1070
      %1072 = vrot.lane.b32.xlu0 %v380, 20
      %v1073 = vpop.permute.xlu0 %1072
      %1074 = vrot.lane.b32.xlu0 %v381, 20
      %v1075 = vpop.permute.xlu0 %1074
      %1076 = vrot.lane.b32.xlu0 %v382, 20
      %v1077 = vpop.permute.xlu0 %1076
      %1078 = vrot.lane.b32.xlu0 %v383, 20
      %v1079 = vpop.permute.xlu0 %1078
      %1080 = vrot.lane.b32.xlu0 %v384, 20
      %v1081 = vpop.permute.xlu0 %1080
      %1082 = vrot.lane.b32.xlu0 %v385, 20
      %v1083 = vpop.permute.xlu0 %1082
      %1084 = vrot.lane.b32.xlu0 %v386, 20
      %v1085 = vpop.permute.xlu0 %1084
      %1086 = vrot.lane.b32.xlu0 %v387, 20
      %v1087 = vpop.permute.xlu0 %1086
      %1088 = vrot.lane.b32.xlu0 %v388, 20
      %v1089 = vpop.permute.xlu0 %1088
      %1090 = vrot.lane.b32.xlu0 %v389, 20
      %v1091 = vpop.permute.xlu0 %1090
      %1092 = vrot.lane.b32.xlu0 %v390, 20
      %v1093 = vpop.permute.xlu0 %1092
      %1094 = vrot.lane.b32.xlu0 %v391, 20
      %v1095 = vpop.permute.xlu0 %1094
      %1096 = vrot.lane.b32.xlu0 %v392, 20
      %v1097 = vpop.permute.xlu0 %1096
      %1098 = vrot.lane.b32.xlu0 %v393, 20
      %v1099 = vpop.permute.xlu0 %1098
      %1100 = vrot.lane.b32.xlu0 %v394, 20
      %v1101 = vpop.permute.xlu0 %1100
      %1166 = vrot.lane.b32.xlu0 %v398, 24
      %v1167 = vpop.permute.xlu0 %1166
      %1168 = vrot.lane.b32.xlu0 %v399, 24
      %v1169 = vpop.permute.xlu0 %1168
      %1170 = vrot.lane.b32.xlu0 %v400, 24
      %v1171 = vpop.permute.xlu0 %1170
      %1172 = vrot.lane.b32.xlu0 %v401, 24
      %v1173 = vpop.permute.xlu0 %1172
      %1174 = vrot.lane.b32.xlu0 %v402, 24
      %v1175 = vpop.permute.xlu0 %1174
      %1176 = vrot.lane.b32.xlu0 %v403, 24
      %v1177 = vpop.permute.xlu0 %1176
      %1178 = vrot.lane.b32.xlu0 %v404, 24
      %v1179 = vpop.permute.xlu0 %1178
      %1180 = vrot.lane.b32.xlu0 %v405, 24
      %v1181 = vpop.permute.xlu0 %1180
      %1182 = vrot.lane.b32.xlu0 %v406, 24
      %v1183 = vpop.permute.xlu0 %1182
      %1184 = vrot.lane.b32.xlu0 %v407, 24
      %v1185 = vpop.permute.xlu0 %1184
      %1186 = vrot.lane.b32.xlu0 %v408, 24
      %v1187 = vpop.permute.xlu0 %1186
      %1188 = vrot.lane.b32.xlu0 %v409, 24
      %v1189 = vpop.permute.xlu0 %1188
      %1190 = vrot.lane.b32.xlu0 %v410, 24
      %v1191 = vpop.permute.xlu0 %1190
      %1192 = vrot.lane.b32.xlu0 %v411, 24
      %v1193 = vpop.permute.xlu0 %1192
      %1194 = vrot.lane.b32.xlu0 %v412, 24
      %v1195 = vpop.permute.xlu0 %1194
      %1196 = vrot.lane.b32.xlu0 %v413, 24
      %v1197 = vpop.permute.xlu0 %1196
      %1198 = vrot.lane.b32.xlu0 %v414, 24
      %v1199 = vpop.permute.xlu0 %1198
      %1200 = vrot.lane.b32.xlu0 %v415, 24
      %v1201 = vpop.permute.xlu0 %1200
      %1202 = vrot.lane.b32.xlu0 %v416, 24
      %v1203 = vpop.permute.xlu0 %1202
      %1204 = vrot.lane.b32.xlu0 %v417, 24
      %v1205 = vpop.permute.xlu0 %1204
      %1206 = vrot.lane.b32.xlu0 %v418, 24
      %v1207 = vpop.permute.xlu0 %1206
      %1208 = vrot.lane.b32.xlu0 %v419, 24
      %v1209 = vpop.permute.xlu0 %1208
      %1210 = vrot.lane.b32.xlu0 %v420, 24
      %v1211 = vpop.permute.xlu0 %1210
      %1212 = vrot.lane.b32.xlu0 %v421, 24
      %v1213 = vpop.permute.xlu0 %1212
      %1214 = vrot.lane.b32.xlu0 %v422, 24
      %v1215 = vpop.permute.xlu0 %1214
      %1216 = vrot.lane.b32.xlu0 %v423, 24
      %v1217 = vpop.permute.xlu0 %1216
      %1218 = vrot.lane.b32.xlu0 %v424, 24
      %v1219 = vpop.permute.xlu0 %1218
      %1220 = vrot.lane.b32.xlu0 %v425, 24
      %v1221 = vpop.permute.xlu0 %1220
      %1222 = vrot.lane.b32.xlu0 %v426, 24
      %v1223 = vpop.permute.xlu0 %1222
      %1224 = vrot.lane.b32.xlu0 %v427, 24
      %v1225 = vpop.permute.xlu0 %1224
      %1226 = vrot.lane.b32.xlu0 %v428, 24
      %v1227 = vpop.permute.xlu0 %1226
      %1228 = vrot.lane.b32.xlu0 %v429, 24
      %v1229 = vpop.permute.xlu0 %1228
      %1294 = vrot.lane.b32.xlu0 %v430, 28
      %v1295 = vpop.permute.xlu0 %1294
      %1296 = vrot.lane.b32.xlu0 %v431, 28
      %v1297 = vpop.permute.xlu0 %1296
      %1298 = vrot.lane.b32.xlu0 %v432, 28
      %v1299 = vpop.permute.xlu0 %1298
      %1300 = vrot.lane.b32.xlu0 %v433, 28
      %v1301 = vpop.permute.xlu0 %1300
      %1302 = vrot.lane.b32.xlu0 %v434, 28
      %v1303 = vpop.permute.xlu0 %1302
      %1304 = vrot.lane.b32.xlu0 %v435, 28
      %v1305 = vpop.permute.xlu0 %1304
      %1306 = vrot.lane.b32.xlu0 %v436, 28
      %v1307 = vpop.permute.xlu0 %1306
      %1308 = vrot.lane.b32.xlu0 %v437, 28
      %v1309 = vpop.permute.xlu0 %1308
      %1310 = vrot.lane.b32.xlu0 %v438, 28
      %v1311 = vpop.permute.xlu0 %1310
      %1312 = vrot.lane.b32.xlu0 %v439, 28
      %v1313 = vpop.permute.xlu0 %1312
      %1314 = vrot.lane.b32.xlu0 %v440, 28
      %v1315 = vpop.permute.xlu0 %1314
      %1316 = vrot.lane.b32.xlu0 %v441, 28
      %v1317 = vpop.permute.xlu0 %1316
      %1318 = vrot.lane.b32.xlu0 %v442, 28
      %v1319 = vpop.permute.xlu0 %1318
      %1320 = vrot.lane.b32.xlu0 %v443, 28
      %v1321 = vpop.permute.xlu0 %1320
      %1322 = vrot.lane.b32.xlu0 %v444, 28
      %v1323 = vpop.permute.xlu0 %1322
      %1324 = vrot.lane.b32.xlu0 %v445, 28
      %v1325 = vpop.permute.xlu0 %1324
      %1326 = vrot.lane.b32.xlu0 %v446, 28
      %v1327 = vpop.permute.xlu0 %1326
      %1328 = vrot.lane.b32.xlu0 %v447, 28
      %v1329 = vpop.permute.xlu0 %1328
      %1330 = vrot.lane.b32.xlu0 %v448, 28
      %v1331 = vpop.permute.xlu0 %1330
      %1332 = vrot.lane.b32.xlu0 %v449, 28
      %v1333 = vpop.permute.xlu0 %1332
      %1334 = vrot.lane.b32.xlu0 %v450, 28
      %v1335 = vpop.permute.xlu0 %1334
      %1336 = vrot.lane.b32.xlu0 %v451, 28
      %v1337 = vpop.permute.xlu0 %1336
      %1338 = vrot.lane.b32.xlu0 %v452, 28
      %v1339 = vpop.permute.xlu0 %1338
      %1340 = vrot.lane.b32.xlu0 %v453, 28
      %v1341 = vpop.permute.xlu0 %1340
      %1342 = vrot.lane.b32.xlu0 %v454, 28
      %v1343 = vpop.permute.xlu0 %1342
      %1344 = vrot.lane.b32.xlu0 %v455, 28
      %v1345 = vpop.permute.xlu0 %1344
      %1346 = vrot.lane.b32.xlu0 %v456, 28
      %v1347 = vpop.permute.xlu0 %1346
      %1348 = vrot.lane.b32.xlu0 %v457, 28
      %v1349 = vpop.permute.xlu0 %1348
      %1350 = vrot.lane.b32.xlu0 %v458, 28
      %v1351 = vpop.permute.xlu0 %1350
      %1352 = vrot.lane.b32.xlu0 %v459, 28
      %v1353 = vpop.permute.xlu0 %1352
      %1354 = vrot.lane.b32.xlu0 %v460, 28
      %v1355 = vpop.permute.xlu0 %1354
      %1356 = vrot.lane.b32.xlu0 %v461, 28
      %v1357 = vpop.permute.xlu0 %1356
      %1422 = vrot.lane.b32.xlu0 %v462, 32
      %v1423 = vpop.permute.xlu0 %1422
      %1424 = vrot.lane.b32.xlu0 %v463, 32
      %v1425 = vpop.permute.xlu0 %1424
      %1426 = vrot.lane.b32.xlu0 %v464, 32
      %v1427 = vpop.permute.xlu0 %1426
      %1428 = vrot.lane.b32.xlu0 %v465, 32
      %v1429 = vpop.permute.xlu0 %1428
      %1430 = vrot.lane.b32.xlu0 %v466, 32
      %v1431 = vpop.permute.xlu0 %1430
      %1432 = vrot.lane.b32.xlu0 %v467, 32
      %v1433 = vpop.permute.xlu0 %1432
      %1434 = vrot.lane.b32.xlu0 %v468, 32
      %v1435 = vpop.permute.xlu0 %1434
      %1436 = vrot.lane.b32.xlu0 %v469, 32
      %v1437 = vpop.permute.xlu0 %1436
      %1438 = vrot.lane.b32.xlu0 %v470, 32
      %v1439 = vpop.permute.xlu0 %1438
      %1440 = vrot.lane.b32.xlu0 %v471, 32
      %v1441 = vpop.permute.xlu0 %1440
      %1442 = vrot.lane.b32.xlu0 %v472, 32
      %v1443 = vpop.permute.xlu0 %1442
      %1444 = vrot.lane.b32.xlu0 %v473, 32
      %v1445 = vpop.permute.xlu0 %1444
      %1446 = vrot.lane.b32.xlu0 %v474, 32
      %v1447 = vpop.permute.xlu0 %1446
      %1448 = vrot.lane.b32.xlu0 %v475, 32
      %v1449 = vpop.permute.xlu0 %1448
      %1450 = vrot.lane.b32.xlu0 %v476, 32
      %v1451 = vpop.permute.xlu0 %1450
      %1452 = vrot.lane.b32.xlu0 %v477, 32
      %v1453 = vpop.permute.xlu0 %1452
      %1454 = vrot.lane.b32.xlu0 %v478, 32
      %v1455 = vpop.permute.xlu0 %1454
      %1456 = vrot.lane.b32.xlu0 %v479, 32
      %v1457 = vpop.permute.xlu0 %1456
      %1458 = vrot.lane.b32.xlu0 %v480, 32
      %v1459 = vpop.permute.xlu0 %1458
      %1460 = vrot.lane.b32.xlu0 %v481, 32
      %v1461 = vpop.permute.xlu0 %1460
      %1462 = vrot.lane.b32.xlu0 %v482, 32
      %v1463 = vpop.permute.xlu0 %1462
      %1464 = vrot.lane.b32.xlu0 %v483, 32
      %v1465 = vpop.permute.xlu0 %1464
      %1466 = vrot.lane.b32.xlu0 %v484, 32
      %v1467 = vpop.permute.xlu0 %1466
      %1468 = vrot.lane.b32.xlu0 %v485, 32
      %v1469 = vpop.permute.xlu0 %1468
      %1470 = vrot.lane.b32.xlu0 %v486, 32
      %v1471 = vpop.permute.xlu0 %1470
      %1472 = vrot.lane.b32.xlu0 %v487, 32
      %v1473 = vpop.permute.xlu0 %1472
      %1474 = vrot.lane.b32.xlu0 %v488, 32
      %v1475 = vpop.permute.xlu0 %1474
      %1476 = vrot.lane.b32.xlu0 %v489, 32
      %v1477 = vpop.permute.xlu0 %1476
      %1478 = vrot.lane.b32.xlu0 %v490, 32
      %v1479 = vpop.permute.xlu0 %1478
      %1480 = vrot.lane.b32.xlu0 %v491, 32
      %v1481 = vpop.permute.xlu0 %1480
      %1482 = vrot.lane.b32.xlu0 %v492, 32
      %v1483 = vpop.permute.xlu0 %1482
      %1484 = vrot.lane.b32.xlu0 %v493, 32
      %v1485 = vpop.permute.xlu0 %1484
      %vm1518 = vcmask 31744
      %v1519 = vsel %vm1518, %v200, %v527
      %v1520 = vsel %vm1518, %v201, %v529
      %v1521 = vsel %vm1518, %v202, %v531
      %v1522 = vsel %vm1518, %v203, %v533
      %v1523 = vsel %vm1518, %v204, %v535
      %v1524 = vsel %vm1518, %v205, %v537
      %v1525 = vsel %vm1518, %v206, %v539
      %v1526 = vsel %vm1518, %v207, %v541
      %v1527 = vsel %vm1518, %v208, %v543
      %v1528 = vsel %vm1518, %v209, %v545
      %v1529 = vsel %vm1518, %v210, %v547
      %v1530 = vsel %vm1518, %v211, %v549
      %v1531 = vsel %vm1518, %v212, %v551
      %v1532 = vsel %vm1518, %v213, %v553
      %v1533 = vsel %vm1518, %v214, %v555
      %v1534 = vsel %vm1518, %v215, %v557
      %v1535 = vsel %vm1518, %v216, %v559
      %v1536 = vsel %vm1518, %v217, %v561
      %v1537 = vsel %vm1518, %v218, %v563
      %v1538 = vsel %vm1518, %v219, %v565
      %v1539 = vsel %vm1518, %v220, %v567
      %v1540 = vsel %vm1518, %v221, %v569
      %v1541 = vsel %vm1518, %v222, %v571
      %v1542 = vsel %vm1518, %v223, %v573
      %v1543 = vsel %vm1518, %v224, %v575
      %v1544 = vsel %vm1518, %v225, %v577
      %v1545 = vsel %vm1518, %v226, %v579
      %v1546 = vsel %vm1518, %v227, %v581
      %v1547 = vsel %vm1518, %v228, %v583
      %v1548 = vsel %vm1518, %v229, %v585
      %v1549 = vsel %vm1518, %v230, %v587
      %v1550 = vsel %vm1518, %v231, %v589
      %vm1551 = vcmask 64512
      %v1552 = vsel %vm1551, %v1519, %v655
      %v1553 = vsel %vm1551, %v1520, %v657
      %v1554 = vsel %vm1551, %v1521, %v659
      %v1555 = vsel %vm1551, %v1522, %v661
      %v1556 = vsel %vm1551, %v1523, %v663
      %v1557 = vsel %vm1551, %v1524, %v665
      %v1558 = vsel %vm1551, %v1525, %v667
      %v1559 = vsel %vm1551, %v1526, %v669
      %v1560 = vsel %vm1551, %v1527, %v671
      %v1561 = vsel %vm1551, %v1528, %v673
      %v1562 = vsel %vm1551, %v1529, %v675
      %v1563 = vsel %vm1551, %v1530, %v677
      %v1564 = vsel %vm1551, %v1531, %v679
      %v1565 = vsel %vm1551, %v1532, %v681
      %v1566 = vsel %vm1551, %v1533, %v683
      %v1567 = vsel %vm1551, %v1534, %v685
      %v1568 = vsel %vm1551, %v1535, %v687
      %v1569 = vsel %vm1551, %v1536, %v689
      %v1570 = vsel %vm1551, %v1537, %v691
      %v1571 = vsel %vm1551, %v1538, %v693
      %v1572 = vsel %vm1551, %v1539, %v695
      %v1573 = vsel %vm1551, %v1540, %v697
      %v1574 = vsel %vm1551, %v1541, %v699
      %v1575 = vsel %vm1551, %v1542, %v701
      %v1576 = vsel %vm1551, %v1543, %v703
      %v1577 = vsel %vm1551, %v1544, %v705
      %v1578 = vsel %vm1551, %v1545, %v707
      %v1579 = vsel %vm1551, %v1546, %v709
      %v1580 = vsel %vm1551, %v1547, %v711
      %v1581 = vsel %vm1551, %v1548, %v713
      %v1582 = vsel %vm1551, %v1549, %v715
      %v1583 = vsel %vm1551, %v1550, %v717
      %vm1584 = vcmask 97280
      %v1585 = vsel %vm1584, %v1552, %v783
      %v1586 = vsel %vm1584, %v1553, %v785
      %v1587 = vsel %vm1584, %v1554, %v787
      %v1588 = vsel %vm1584, %v1555, %v789
      %v1589 = vsel %vm1584, %v1556, %v791
      %v1590 = vsel %vm1584, %v1557, %v793
      %v1591 = vsel %vm1584, %v1558, %v795
      %v1592 = vsel %vm1584, %v1559, %v797
      %v1593 = vsel %vm1584, %v1560, %v799
      %v1594 = vsel %vm1584, %v1561, %v801
      %v1595 = vsel %vm1584, %v1562, %v803
      %v1596 = vsel %vm1584, %v1563, %v805
      %v1597 = vsel %vm1584, %v1564, %v807
      %v1598 = vsel %vm1584, %v1565, %v809
      %v1599 = vsel %vm1584, %v1566, %v811
      %v1600 = vsel %vm1584, %v1567, %v813
      %v1601 = vsel %vm1584, %v1568, %v815
      %v1602 = vsel %vm1584, %v1569, %v817
      %v1603 = vsel %vm1584, %v1570, %v819
      %v1604 = vsel %vm1584, %v1571, %v821
      %v1605 = vsel %vm1584, %v1572, %v823
      %v1606 = vsel %vm1584, %v1573, %v825
      %v1607 = vsel %vm1584, %v1574, %v827
      %v1608 = vsel %vm1584, %v1575, %v829
      %v1609 = vsel %vm1584, %v1576, %v831
      %v1610 = vsel %vm1584, %v1577, %v833
      %v1611 = vsel %vm1584, %v1578, %v835
      %v1612 = vsel %vm1584, %v1579, %v837
      %v1613 = vsel %vm1584, %v1580, %v839
      %v1614 = vsel %vm1584, %v1581, %v841
      %v1615 = vsel %vm1584, %v1582, %v843
      %v1616 = vsel %vm1584, %v1583, %v845
      %vm1617 = vcmask 130048
      %v1618 = vsel %vm1617, %v1585, %v911
      %v1619 = vsel %vm1617, %v1586, %v913
      %v1620 = vsel %vm1617, %v1587, %v915
      %v1621 = vsel %vm1617, %v1588, %v917
      %v1622 = vsel %vm1617, %v1589, %v919
      %v1623 = vsel %vm1617, %v1590, %v921
      %v1624 = vsel %vm1617, %v1591, %v923
      %v1625 = vsel %vm1617, %v1592, %v925
      %v1626 = vsel %vm1617, %v1593, %v927
      %v1627 = vsel %vm1617, %v1594, %v929
      %v1628 = vsel %vm1617, %v1595, %v931
      %v1629 = vsel %vm1617, %v1596, %v933
      %v1630 = vsel %vm1617, %v1597, %v935
      %v1631 = vsel %vm1617, %v1598, %v937
      %v1632 = vsel %vm1617, %v1599, %v939
      %v1633 = vsel %vm1617, %v1600, %v941
      %v1634 = vsel %vm1617, %v1601, %v943
      %v1635 = vsel %vm1617, %v1602, %v945
      %v1636 = vsel %vm1617, %v1603, %v947
      %v1637 = vsel %vm1617, %v1604, %v949
      %v1638 = vsel %vm1617, %v1605, %v951
      %v1639 = vsel %vm1617, %v1606, %v953
      %v1640 = vsel %vm1617, %v1607, %v955
      %v1641 = vsel %vm1617, %v1608, %v957
      %v1642 = vsel %vm1617, %v1609, %v959
      %v1643 = vsel %vm1617, %v1610, %v961
      %v1644 = vsel %vm1617, %v1611, %v963
      %v1645 = vsel %vm1617, %v1612, %v965
      %v1646 = vsel %vm1617, %v1613, %v967
      %v1647 = vsel %vm1617, %v1614, %v969
      %v1648 = vsel %vm1617, %v1615, %v971
      %v1649 = vsel %vm1617, %v1616, %v973
      %vm1650 = vcmask 162816
      %v1651 = vsel %vm1650, %v1618, %v1039
      %v1652 = vsel %vm1650, %v1619, %v1041
      %v1653 = vsel %vm1650, %v1620, %v1043
      %v1654 = vsel %vm1650, %v1621, %v1045
      %v1655 = vsel %vm1650, %v1622, %v1047
      %v1656 = vsel %vm1650, %v1623, %v1049
      %v1657 = vsel %vm1650, %v1624, %v1051
      %v1658 = vsel %vm1650, %v1625, %v1053
      %v1659 = vsel %vm1650, %v1626, %v1055
      %v1660 = vsel %vm1650, %v1627, %v1057
      %v1661 = vsel %vm1650, %v1628, %v1059
      %v1662 = vsel %vm1650, %v1629, %v1061
      %v1663 = vsel %vm1650, %v1630, %v1063
      %v1664 = vsel %vm1650, %v1631, %v1065
      %v1665 = vsel %vm1650, %v1632, %v1067
      %v1666 = vsel %vm1650, %v1633, %v1069
      %v1667 = vsel %vm1650, %v1634, %v1071
      %v1668 = vsel %vm1650, %v1635, %v1073
      %v1669 = vsel %vm1650, %v1636, %v1075
      %v1670 = vsel %vm1650, %v1637, %v1077
      %v1671 = vsel %vm1650, %v1638, %v1079
      %v1672 = vsel %vm1650, %v1639, %v1081
      %v1673 = vsel %vm1650, %v1640, %v1083
      %v1674 = vsel %vm1650, %v1641, %v1085
      %v1675 = vsel %vm1650, %v1642, %v1087
      %v1676 = vsel %vm1650, %v1643, %v1089
      %v1677 = vsel %vm1650, %v1644, %v1091
      %v1678 = vsel %vm1650, %v1645, %v1093
      %v1679 = vsel %vm1650, %v1646, %v1095
      %v1680 = vsel %vm1650, %v1647, %v1097
      %v1681 = vsel %vm1650, %v1648, %v1099
      %v1682 = vsel %vm1650, %v1649, %v1101
      %vm1683 = vcmask 195584
      %v1684 = vsel %vm1683, %v1651, %v1167
      %v1685 = vsel %vm1683, %v1652, %v1169
      %v1686 = vsel %vm1683, %v1653, %v1171
      %v1687 = vsel %vm1683, %v1654, %v1173
      %v1688 = vsel %vm1683, %v1655, %v1175
      %v1689 = vsel %vm1683, %v1656, %v1177
      %v1690 = vsel %vm1683, %v1657, %v1179
      %v1691 = vsel %vm1683, %v1658, %v1181
      %v1692 = vsel %vm1683, %v1659, %v1183
      %v1693 = vsel %vm1683, %v1660, %v1185
      %v1694 = vsel %vm1683, %v1661, %v1187
      %v1695 = vsel %vm1683, %v1662, %v1189
      %v1696 = vsel %vm1683, %v1663, %v1191
      %v1697 = vsel %vm1683, %v1664, %v1193
      %v1698 = vsel %vm1683, %v1665, %v1195
      %v1699 = vsel %vm1683, %v1666, %v1197
      %v1700 = vsel %vm1683, %v1667, %v1199
      %v1701 = vsel %vm1683, %v1668, %v1201
      %v1702 = vsel %vm1683, %v1669, %v1203
      %v1703 = vsel %vm1683, %v1670, %v1205
      %v1704 = vsel %vm1683, %v1671, %v1207
      %v1705 = vsel %vm1683, %v1672, %v1209
      %v1706 = vsel %vm1683, %v1673, %v1211
      %v1707 = vsel %vm1683, %v1674, %v1213
      %v1708 = vsel %vm1683, %v1675, %v1215
      %v1709 = vsel %vm1683, %v1676, %v1217
      %v1710 = vsel %vm1683, %v1677, %v1219
      %v1711 = vsel %vm1683, %v1678, %v1221
      %v1712 = vsel %vm1683, %v1679, %v1223
      %v1713 = vsel %vm1683, %v1680, %v1225
      %v1714 = vsel %vm1683, %v1681, %v1227
      %v1715 = vsel %vm1683, %v1682, %v1229
      %vm1716 = vcmask 228352
      %v1717 = vsel %vm1716, %v1684, %v1295
      %v1718 = vsel %vm1716, %v1685, %v1297
      %v1719 = vsel %vm1716, %v1686, %v1299
      %v1720 = vsel %vm1716, %v1687, %v1301
      %v1721 = vsel %vm1716, %v1688, %v1303
      %v1722 = vsel %vm1716, %v1689, %v1305
      %v1723 = vsel %vm1716, %v1690, %v1307
      %v1724 = vsel %vm1716, %v1691, %v1309
      %v1725 = vsel %vm1716, %v1692, %v1311
      %v1726 = vsel %vm1716, %v1693, %v1313
      %v1727 = vsel %vm1716, %v1694, %v1315
      %v1728 = vsel %vm1716, %v1695, %v1317
      %v1729 = vsel %vm1716, %v1696, %v1319
      %v1730 = vsel %vm1716, %v1697, %v1321
      %v1731 = vsel %vm1716, %v1698, %v1323
      %v1732 = vsel %vm1716, %v1699, %v1325
      %v1733 = vsel %vm1716, %v1700, %v1327
      %v1734 = vsel %vm1716, %v1701, %v1329
      %v1735 = vsel %vm1716, %v1702, %v1331
      %v1736 = vsel %vm1716, %v1703, %v1333
      %v1737 = vsel %vm1716, %v1704, %v1335
      %v1738 = vsel %vm1716, %v1705, %v1337
      %v1739 = vsel %vm1716, %v1706, %v1339
      %v1740 = vsel %vm1716, %v1707, %v1341
      %v1741 = vsel %vm1716, %v1708, %v1343
      %v1742 = vsel %vm1716, %v1709, %v1345
      %v1743 = vsel %vm1716, %v1710, %v1347
      %v1744 = vsel %vm1716, %v1711, %v1349
      %v1745 = vsel %vm1716, %v1712, %v1351
      %v1746 = vsel %vm1716, %v1713, %v1353
      %v1747 = vsel %vm1716, %v1714, %v1355
      %v1748 = vsel %vm1716, %v1715, %v1357
      %vm1749 = vcmask 261120
      %v1750 = vsel %vm1749, %v1717, %v1423
      %v1751 = vsel %vm1749, %v1718, %v1425
      %v1752 = vsel %vm1749, %v1719, %v1427
      %v1753 = vsel %vm1749, %v1720, %v1429
      %v1754 = vsel %vm1749, %v1721, %v1431
      %v1755 = vsel %vm1749, %v1722, %v1433
      %v1756 = vsel %vm1749, %v1723, %v1435
      %v1757 = vsel %vm1749, %v1724, %v1437
      %v1758 = vsel %vm1749, %v1725, %v1439
      %v1759 = vsel %vm1749, %v1726, %v1441
      %v1760 = vsel %vm1749, %v1727, %v1443
      %v1761 = vsel %vm1749, %v1728, %v1445
      %v1762 = vsel %vm1749, %v1729, %v1447
      %v1763 = vsel %vm1749, %v1730, %v1449
      %v1764 = vsel %vm1749, %v1731, %v1451
      %v1765 = vsel %vm1749, %v1732, %v1453
      %v1766 = vsel %vm1749, %v1733, %v1455
      %v1767 = vsel %vm1749, %v1734, %v1457
      %v1768 = vsel %vm1749, %v1735, %v1459
      %v1769 = vsel %vm1749, %v1736, %v1461
      %v1770 = vsel %vm1749, %v1737, %v1463
      %v1771 = vsel %vm1749, %v1738, %v1465
      %v1772 = vsel %vm1749, %v1739, %v1467
      %v1773 = vsel %vm1749, %v1740, %v1469
      %v1774 = vsel %vm1749, %v1741, %v1471
      %v1775 = vsel %vm1749, %v1742, %v1473
      %v1776 = vsel %vm1749, %v1743, %v1475
      %v1777 = vsel %vm1749, %v1744, %v1477
      %v1778 = vsel %vm1749, %v1745, %v1479
      %v1779 = vsel %vm1749, %v1746, %v1481
      %v1780 = vsel %vm1749, %v1747, %v1483
      %v1781 = vsel %vm1749, %v1748, %v1485
      %v1782 = vld [vmem:[%s1] sm:$0xff]
      %v1783 = vld [vmem:[%s1 + $0x8] sm:$0xff]
      %v1784 = vld [vmem:[%s1 + $0x10] sm:$0xff]
      %v1785 = vld [vmem:[%s1 + $0x18] sm:$0xff]
      %v1786 = vld [vmem:[%s1 + $0x20] sm:$0xf]
      %vm1787 = vcmask 293888
      %v1789 = vsel %vm1787, %v1750, 0
      %v1792 = vsel %vm1787, %v1751, 0
      %v1795 = vsel %vm1787, %v1752, 0
      %v1798 = vsel %vm1787, %v1753, 0
      %v1801 = vsel %vm1787, %v1754, 0
      %v1804 = vsel %vm1787, %v1755, 0
      %v1807 = vsel %vm1787, %v1756, 0
      %v1810 = vsel %vm1787, %v1757, 0
      %v1813 = vsel %vm1787, %v1758, 0
      %v1816 = vsel %vm1787, %v1759, 0
      %v1819 = vsel %vm1787, %v1760, 0
      %v1822 = vsel %vm1787, %v1761, 0
      %v1825 = vsel %vm1787, %v1762, 0
      %v1828 = vsel %vm1787, %v1763, 0
      %v1831 = vsel %vm1787, %v1764, 0
      %v1834 = vsel %vm1787, %v1765, 0
      %v1837 = vsel %vm1787, %v1766, 0
      %v1840 = vsel %vm1787, %v1767, 0
      %v1843 = vsel %vm1787, %v1768, 0
      %v1846 = vsel %vm1787, %v1769, 0
      %v1849 = vsel %vm1787, %v1770, 0
      %v1852 = vsel %vm1787, %v1771, 0
      %v1855 = vsel %vm1787, %v1772, 0
      %v1858 = vsel %vm1787, %v1773, 0
      %v1861 = vsel %vm1787, %v1774, 0
      %v1864 = vsel %vm1787, %v1775, 0
      %v1867 = vsel %vm1787, %v1776, 0
      %v1870 = vsel %vm1787, %v1777, 0
      %v1873 = vsel %vm1787, %v1778, 0
      %v1876 = vsel %vm1787, %v1779, 0
      %v1879 = vsel %vm1787, %v1780, 0
      %v1882 = vsel %vm1787, %v1781, 0
      %vm1884 = vcmask 1043456
      %v1886 = vsel %vm1884, %v1786, 0
      %1888 = vmatprep.subr.mxu0 0.0
      %1889 = vmatpush1.msra.mxu0 %v1782
      %1890 = vmatprep.subr.mxu0 0.0
      %1891 = vmatpush1.msra.mxu0 %v1783
      %1892 = vmatprep.subr.mxu0 0.0
      %1893 = vmatpush1.msra.mxu0 %v1784
      %1894 = vmatprep.subr.mxu0 0.0
      %1895 = vmatpush1.msra.mxu0 %v1785
      %1896 = vmatprep.subr.mxu0 0.0
      %1897 = vmatpush1.msra.mxu0 %v1886
      %1898 = vmatprep.subr.mxu0 0.0
      %1899 = vmatpush1.msra.mxu0 0.0
      %1900 = vmatprep.subr.mxu0 0.0
      %1901 = vmatpush1.msra.mxu0 0.0
      %1902 = vmatprep.subr.mxu0 0.0
      %1903 = vmatpush1.msra.mxu0 0.0
      %1904 = vmatprep.subr.mxu0 0.0
      %1905 = vmatpush1.msra.mxu0 0.0
      %1906 = vmatprep.subr.mxu0 0.0
      %1907 = vmatpush1.msra.mxu0 0.0
      %1908 = vmatprep.subr.mxu0 0.0
      %1909 = vmatpush1.msra.mxu0 0.0
      %1910 = vmatprep.subr.mxu0 0.0
      %1911 = vmatpush1.msra.mxu0 0.0
      %1912 = vmatprep.subr.mxu0 0.0
      %1913 = vmatpush1.msra.mxu0 0.0
      %1914 = vmatprep.subr.mxu0 0.0
      %1915 = vmatpush1.msra.mxu0 0.0
      %1916 = vmatprep.subr.mxu0 0.0
      %1917 = vmatpush1.msra.mxu0 0.0
      %1918 = vmatprep.subr.mxu0 0.0
      %1919 = vmatpush1.msra.mxu0 0.0
      %1920 = vmatprep.subr.mxu0 0.0
      %1921 = vmatpush1.msra.mxu0 0.0
      %1922 = vmatprep.subr.mxu0 0.0
      %1923 = vmatpush1.msra.mxu0 0.0
      %1924 = vmatprep.subr.mxu0 0.0
      %1925 = vmatpush1.msra.mxu0 0.0
      %1926 = vmatprep.subr.mxu0 0.0
      %1927 = vmatpush1.msra.mxu0 0.0
      %1928 = vmatprep.subr.mxu0 0.0
      %1929 = vmatpush1.msra.mxu0 0.0
      %1930 = vmatprep.subr.mxu0 0.0
      %1931 = vmatpush1.msra.mxu0 0.0
      %1932 = vmatprep.subr.mxu0 0.0
      %1933 = vmatpush1.msra.mxu0 0.0
      %1934 = vmatprep.subr.mxu0 0.0
      %1935 = vmatpush1.msra.mxu0 0.0
      %1936 = vmatprep.subr.mxu0 0.0
      %1937 = vmatpush1.msra.mxu0 0.0
      %1938 = vmatprep.subr.mxu0 0.0
      %1939 = vmatpush1.msra.mxu0 0.0
      %1940 = vmatprep.subr.mxu0 0.0
      %1941 = vmatpush1.msra.mxu0 0.0
      %1942 = vmatprep.subr.mxu0 0.0
      %1943 = vmatpush1.msra.mxu0 0.0
      %1944 = vmatprep.subr.mxu0 0.0
      %1945 = vmatpush1.msra.mxu0 0.0
      %1946 = vmatprep.subr.mxu0 0.0
      %1947 = vmatpush1.msra.mxu0 0.0
      %1948 = vmatprep.subr.mxu0 0.0
      %1949 = vmatpush1.msra.mxu0 0.0
      %1950 = vmatprep.subr.mxu0 0.0
      %1951 = vmatpush1.msra.mxu0 0.0
      %1952 = vmatprep.mubr.f32.mxu0 0.0
      %1953 = vmatmul.mubr.f32.gmra.mrb[0].mxu0 %v1789
      %v1954 = vpop.f32.mrb[0].mxu0
      %v1955 = vadd.f32 0.0, %v1954
      %v1956 = vpop.f32.mrb[0].mxu0
      %1957 = vmatprep.mubr.f32.mxu0 0.0
      %1958 = vmatmul.mubr.f32.gmra.mrb[0].mxu0 %v1792
      %v1959 = vpop.f32.mrb[0].mxu0
      %v1960 = vadd.f32 0.0, %v1959
      %v1961 = vpop.f32.mrb[0].mxu0
      %1962 = vmatprep.mubr.f32.mxu0 0.0
      %1963 = vmatmul.mubr.f32.gmra.mrb[0].mxu0 %v1795
      %v1964 = vpop.f32.mrb[0].mxu0
      %v1965 = vadd.f32 0.0, %v1964
      %v1966 = vpop.f32.mrb[0].mxu0
      %1967 = vmatprep.mubr.f32.mxu0 0.0
      %1968 = vmatmul.mubr.f32.gmra.mrb[0].mxu0 %v1798
      %v1969 = vpop.f32.mrb[0].mxu0
      %v1970 = vadd.f32 0.0, %v1969
      %v1971 = vpop.f32.mrb[0].mxu0
      %1972 = vmatprep.mubr.f32.mxu0 0.0
      %1973 = vmatmul.mubr.f32.gmra.mrb[0].mxu0 %v1801
      %v1974 = vpop.f32.mrb[0].mxu0
      %v1975 = vadd.f32 0.0, %v1974
      %v1976 = vpop.f32.mrb[0].mxu0
      %1977 = vmatprep.mubr.f32.mxu0 0.0
      %1978 = vmatmul.mubr.f32.gmra.mrb[0].mxu0 %v1804
      %v1979 = vpop.f32.mrb[0].mxu0
      %v1980 = vadd.f32 0.0, %v1979
      %v1981 = vpop.f32.mrb[0].mxu0
      %1982 = vmatprep.mubr.f32.mxu0 0.0
      %1983 = vmatmul.mubr.f32.gmra.mrb[0].mxu0 %v1807
      %v1984 = vpop.f32.mrb[0].mxu0
      %v1985 = vadd.f32 0.0, %v1984
      %v1986 = vpop.f32.mrb[0].mxu0
      %1987 = vmatprep.mubr.f32.mxu0 0.0
      %1988 = vmatmul.mubr.f32.gmra.mrb[0].mxu0 %v1810
      %v1989 = vpop.f32.mrb[0].mxu0
      %v1990 = vadd.f32 0.0, %v1989
      %v1991 = vpop.f32.mrb[0].mxu0
      %1992 = vmatprep.mubr.f32.mxu0 0.0
      %1993 = vmatmul.mubr.f32.gmra.mrb[0].mxu0 %v1813
      %v1994 = vpop.f32.mrb[0].mxu0
      %v1995 = vadd.f32 0.0, %v1994
      %v1996 = vpop.f32.mrb[0].mxu0
      %1997 = vmatprep.mubr.f32.mxu0 0.0
      %1998 = vmatmul.mubr.f32.gmra.mrb[0].mxu0 %v1816
      %v1999 = vpop.f32.mrb[0].mxu0
      %v2000 = vadd.f32 0.0, %v1999
      %v2001 = vpop.f32.mrb[0].mxu0
      %2002 = vmatprep.mubr.f32.mxu0 0.0
      %2003 = vmatmul.mubr.f32.gmra.mrb[0].mxu0 %v1819
      %v2004 = vpop.f32.mrb[0].mxu0
      %v2005 = vadd.f32 0.0, %v2004
      %v2006 = vpop.f32.mrb[0].mxu0
      %2007 = vmatprep.mubr.f32.mxu0 0.0
      %2008 = vmatmul.mubr.f32.gmra.mrb[0].mxu0 %v1822
      %v2009 = vpop.f32.mrb[0].mxu0
      %v2010 = vadd.f32 0.0, %v2009
      %v2011 = vpop.f32.mrb[0].mxu0
      %2012 = vmatprep.mubr.f32.mxu0 0.0
      %2013 = vmatmul.mubr.f32.gmra.mrb[0].mxu0 %v1825
      %v2014 = vpop.f32.mrb[0].mxu0
      %v2015 = vadd.f32 0.0, %v2014
      %v2016 = vpop.f32.mrb[0].mxu0
      %2017 = vmatprep.mubr.f32.mxu0 0.0
      %2018 = vmatmul.mubr.f32.gmra.mrb[0].mxu0 %v1828
      %v2019 = vpop.f32.mrb[0].mxu0
      %v2020 = vadd.f32 0.0, %v2019
      %v2021 = vpop.f32.mrb[0].mxu0
      %2022 = vmatprep.mubr.f32.mxu0 0.0
      %2023 = vmatmul.mubr.f32.gmra.mrb[0].mxu0 %v1831
      %v2024 = vpop.f32.mrb[0].mxu0
      %v2025 = vadd.f32 0.0, %v2024
      %v2026 = vpop.f32.mrb[0].mxu0
      %2027 = vmatprep.mubr.f32.mxu0 0.0
      %2028 = vmatmul.mubr.f32.gmra.mrb[0].mxu0 %v1834
      %v2029 = vpop.f32.mrb[0].mxu0
      %v2030 = vadd.f32 0.0, %v2029
      %v2031 = vpop.f32.mrb[0].mxu0
      %2032 = vmatprep.mubr.f32.mxu0 0.0
      %2033 = vmatmul.mubr.f32.gmra.mrb[0].mxu0 %v1837
      %v2034 = vpop.f32.mrb[0].mxu0
      %v2035 = vadd.f32 0.0, %v2034
      %v2036 = vpop.f32.mrb[0].mxu0
      %2037 = vmatprep.mubr.f32.mxu0 0.0
      %2038 = vmatmul.mubr.f32.gmra.mrb[0].mxu0 %v1840
      %v2039 = vpop.f32.mrb[0].mxu0
      %v2040 = vadd.f32 0.0, %v2039
      %v2041 = vpop.f32.mrb[0].mxu0
      %2042 = vmatprep.mubr.f32.mxu0 0.0
      %2043 = vmatmul.mubr.f32.gmra.mrb[0].mxu0 %v1843
      %v2044 = vpop.f32.mrb[0].mxu0
      %v2045 = vadd.f32 0.0, %v2044
      %v2046 = vpop.f32.mrb[0].mxu0
      %2047 = vmatprep.mubr.f32.mxu0 0.0
      %2048 = vmatmul.mubr.f32.gmra.mrb[0].mxu0 %v1846
      %v2049 = vpop.f32.mrb[0].mxu0
      %v2050 = vadd.f32 0.0, %v2049
      %v2051 = vpop.f32.mrb[0].mxu0
      %2052 = vmatprep.mubr.f32.mxu0 0.0
      %2053 = vmatmul.mubr.f32.gmra.mrb[0].mxu0 %v1849
      %v2054 = vpop.f32.mrb[0].mxu0
      %v2055 = vadd.f32 0.0, %v2054
      %v2056 = vpop.f32.mrb[0].mxu0
      %2057 = vmatprep.mubr.f32.mxu0 0.0
      %2058 = vmatmul.mubr.f32.gmra.mrb[0].mxu0 %v1852
      %v2059 = vpop.f32.mrb[0].mxu0
      %v2060 = vadd.f32 0.0, %v2059
      %v2061 = vpop.f32.mrb[0].mxu0
      %2062 = vmatprep.mubr.f32.mxu0 0.0
      %2063 = vmatmul.mubr.f32.gmra.mrb[0].mxu0 %v1855
      %v2064 = vpop.f32.mrb[0].mxu0
      %v2065 = vadd.f32 0.0, %v2064
      %v2066 = vpop.f32.mrb[0].mxu0
      %2067 = vmatprep.mubr.f32.mxu0 0.0
      %2068 = vmatmul.mubr.f32.gmra.mrb[0].mxu0 %v1858
      %v2069 = vpop.f32.mrb[0].mxu0
      %v2070 = vadd.f32 0.0, %v2069
      %v2071 = vpop.f32.mrb[0].mxu0
      %2072 = vmatprep.mubr.f32.mxu0 0.0
      %2073 = vmatmul.mubr.f32.gmra.mrb[0].mxu0 %v1861
      %v2074 = vpop.f32.mrb[0].mxu0
      %v2075 = vadd.f32 0.0, %v2074
      %v2076 = vpop.f32.mrb[0].mxu0
      %2077 = vmatprep.mubr.f32.mxu0 0.0
      %2078 = vmatmul.mubr.f32.gmra.mrb[0].mxu0 %v1864
      %v2079 = vpop.f32.mrb[0].mxu0
      %v2080 = vadd.f32 0.0, %v2079
      %v2081 = vpop.f32.mrb[0].mxu0
      %2082 = vmatprep.mubr.f32.mxu0 0.0
      %2083 = vmatmul.mubr.f32.gmra.mrb[0].mxu0 %v1867
      %v2084 = vpop.f32.mrb[0].mxu0
      %v2085 = vadd.f32 0.0, %v2084
      %v2086 = vpop.f32.mrb[0].mxu0
      %2087 = vmatprep.mubr.f32.mxu0 0.0
      %2088 = vmatmul.mubr.f32.gmra.mrb[0].mxu0 %v1870
      %v2089 = vpop.f32.mrb[0].mxu0
      %v2090 = vadd.f32 0.0, %v2089
      %v2091 = vpop.f32.mrb[0].mxu0
      %2092 = vmatprep.mubr.f32.mxu0 0.0
      %2093 = vmatmul.mubr.f32.gmra.mrb[0].mxu0 %v1873
      %v2094 = vpop.f32.mrb[0].mxu0
      %v2095 = vadd.f32 0.0, %v2094
      %v2096 = vpop.f32.mrb[0].mxu0
      %2097 = vmatprep.mubr.f32.mxu0 0.0
      %2098 = vmatmul.mubr.f32.gmra.mrb[0].mxu0 %v1876
      %v2099 = vpop.f32.mrb[0].mxu0
      %v2100 = vadd.f32 0.0, %v2099
      %v2101 = vpop.f32.mrb[0].mxu0
      %2102 = vmatprep.mubr.f32.mxu0 0.0
      %2103 = vmatmul.mubr.f32.gmra.mrb[0].mxu0 %v1879
      %v2104 = vpop.f32.mrb[0].mxu0
      %v2105 = vadd.f32 0.0, %v2104
      %v2106 = vpop.f32.mrb[0].mxu0
      %2107 = vmatprep.mubr.f32.mxu0 0.0
      %2108 = vmatmul.mubr.f32.gmra.mrb[0].mxu0 %v1882
      %v2109 = vpop.f32.mrb[0].mxu0
      %v2110 = vadd.f32 0.0, %v2109
      %v2111 = vpop.f32.mrb[0].mxu0
      %2112 = vdwg.mxu0
      %v2114 = vlaneseq
      %v2115 = vshrl.u32 %v2114, 7
      %v2116 = vsub.s32 0, %v2115
      %v2117 = vrot.slane %v197, %v2116
      %v2119 = vadd.f32 %v1955, %v2117
      %v2120 = vadd.f32 %v1960, %v2117
      %v2121 = vadd.f32 %v1965, %v2117
      %v2122 = vadd.f32 %v1970, %v2117
      %v2123 = vadd.f32 %v1975, %v2117
      %v2124 = vadd.f32 %v1980, %v2117
      %v2125 = vadd.f32 %v1985, %v2117
      %v2126 = vadd.f32 %v1990, %v2117
      %v2127 = vadd.f32 %v1995, %v2117
      %v2128 = vadd.f32 %v2000, %v2117
      %v2129 = vadd.f32 %v2005, %v2117
      %v2130 = vadd.f32 %v2010, %v2117
      %v2131 = vadd.f32 %v2015, %v2117
      %v2132 = vadd.f32 %v2020, %v2117
      %v2133 = vadd.f32 %v2025, %v2117
      %v2134 = vadd.f32 %v2030, %v2117
      %v2135 = vadd.f32 %v2035, %v2117
      %v2136 = vadd.f32 %v2040, %v2117
      %v2137 = vadd.f32 %v2045, %v2117
      %v2138 = vadd.f32 %v2050, %v2117
      %v2139 = vadd.f32 %v2055, %v2117
      %v2140 = vadd.f32 %v2060, %v2117
      %v2141 = vadd.f32 %v2065, %v2117
      %v2142 = vadd.f32 %v2070, %v2117
      %v2143 = vadd.f32 %v2075, %v2117
      %v2144 = vadd.f32 %v2080, %v2117
      %v2145 = vadd.f32 %v2085, %v2117
      %v2146 = vadd.f32 %v2090, %v2117
      %v2147 = vadd.f32 %v2095, %v2117
      %v2148 = vadd.f32 %v2100, %v2117
      %v2149 = vadd.f32 %v2105, %v2117
      %v2150 = vadd.f32 %v2110, %v2117
      %2151 = vst.msk [vmem:[%s194] sm:$0xff] %vm1518, %v2119
      %2152 = vst.msk [vmem:[%s194 + $0x8] sm:$0xff] %vm1518, %v2120
      %2153 = vst.msk [vmem:[%s194 + $0x10] sm:$0xff] %vm1518, %v2121
      %2154 = vst.msk [vmem:[%s194 + $0x18] sm:$0xff] %vm1518, %v2122
      %2155 = vst.msk [vmem:[%s194 + $0x20] sm:$0xff] %vm1518, %v2123
      %2156 = vst.msk [vmem:[%s194 + $0x28] sm:$0xff] %vm1518, %v2124
      %2157 = vst.msk [vmem:[%s194 + $0x30] sm:$0xff] %vm1518, %v2125
      %2158 = vst.msk [vmem:[%s194 + $0x38] sm:$0xff] %vm1518, %v2126
      %2159 = vst.msk [vmem:[%s194 + $0x40] sm:$0xff] %vm1518, %v2127
      %2160 = vst.msk [vmem:[%s194 + $0x48] sm:$0xff] %vm1518, %v2128
      %2161 = vst.msk [vmem:[%s194 + $0x50] sm:$0xff] %vm1518, %v2129
      %2162 = vst.msk [vmem:[%s194 + $0x58] sm:$0xff] %vm1518, %v2130
      %2163 = vst.msk [vmem:[%s194 + $0x60] sm:$0xff] %vm1518, %v2131
      %2164 = vst.msk [vmem:[%s194 + $0x68] sm:$0xff] %vm1518, %v2132
      %2165 = vst.msk [vmem:[%s194 + $0x70] sm:$0xff] %vm1518, %v2133
      %2166 = vst.msk [vmem:[%s194 + $0x78] sm:$0xff] %vm1518, %v2134
      %2167 = vst.msk [vmem:[%s194 + $0x80] sm:$0xff] %vm1518, %v2135
      %2168 = vst.msk [vmem:[%s194 + $0x88] sm:$0xff] %vm1518, %v2136
      %2169 = vst.msk [vmem:[%s194 + $0x90] sm:$0xff] %vm1518, %v2137
      %2170 = vst.msk [vmem:[%s194 + $0x98] sm:$0xff] %vm1518, %v2138
      %2171 = vst.msk [vmem:[%s194 + $0xa0] sm:$0xff] %vm1518, %v2139
      %2172 = vst.msk [vmem:[%s194 + $0xa8] sm:$0xff] %vm1518, %v2140
      %2173 = vst.msk [vmem:[%s194 + $0xb0] sm:$0xff] %vm1518, %v2141
      %2174 = vst.msk [vmem:[%s194 + $0xb8] sm:$0xff] %vm1518, %v2142
      %2175 = vst.msk [vmem:[%s194 + $0xc0] sm:$0xff] %vm1518, %v2143
      %2176 = vst.msk [vmem:[%s194 + $0xc8] sm:$0xff] %vm1518, %v2144
      %2177 = vst.msk [vmem:[%s194 + $0xd0] sm:$0xff] %vm1518, %v2145
      %2178 = vst.msk [vmem:[%s194 + $0xd8] sm:$0xff] %vm1518, %v2146
      %2179 = vst.msk [vmem:[%s194 + $0xe0] sm:$0xff] %vm1518, %v2147
      %2180 = vst.msk [vmem:[%s194 + $0xe8] sm:$0xff] %vm1518, %v2148
      %2181 = vst.msk [vmem:[%s194 + $0xf0] sm:$0xff] %vm1518, %v2149
      %2182 = vst.msk [vmem:[%s194 + $0xf8] sm:$0xff] %vm1518, %v2150
      %2183 = vrot.lane.b32.xlu0 %v2117, 4
      %v2184 = vpop.permute.xlu0 %2183
      %v2186 = vadd.f32 %v1955, %v2184
      %v2187 = vadd.f32 %v1960, %v2184
      %v2188 = vadd.f32 %v1965, %v2184
      %v2189 = vadd.f32 %v1970, %v2184
      %v2190 = vadd.f32 %v1975, %v2184
      %v2191 = vadd.f32 %v1980, %v2184
      %v2192 = vadd.f32 %v1985, %v2184
      %v2193 = vadd.f32 %v1990, %v2184
      %v2194 = vadd.f32 %v1995, %v2184
      %v2195 = vadd.f32 %v2000, %v2184
      %v2196 = vadd.f32 %v2005, %v2184
      %v2197 = vadd.f32 %v2010, %v2184
      %v2198 = vadd.f32 %v2015, %v2184
      %v2199 = vadd.f32 %v2020, %v2184
      %v2200 = vadd.f32 %v2025, %v2184
      %v2201 = vadd.f32 %v2030, %v2184
      %v2202 = vadd.f32 %v2035, %v2184
      %v2203 = vadd.f32 %v2040, %v2184
      %v2204 = vadd.f32 %v2045, %v2184
      %v2205 = vadd.f32 %v2050, %v2184
      %v2206 = vadd.f32 %v2055, %v2184
      %v2207 = vadd.f32 %v2060, %v2184
      %v2208 = vadd.f32 %v2065, %v2184
      %v2209 = vadd.f32 %v2070, %v2184
      %v2210 = vadd.f32 %v2075, %v2184
      %v2211 = vadd.f32 %v2080, %v2184
      %v2212 = vadd.f32 %v2085, %v2184
      %v2213 = vadd.f32 %v2090, %v2184
      %v2214 = vadd.f32 %v2095, %v2184
      %v2215 = vadd.f32 %v2100, %v2184
      %v2216 = vadd.f32 %v2105, %v2184
      %v2217 = vadd.f32 %v2110, %v2184
      %2250 = vrot.lane.b32.xlu0 %v2186, 124
      %v2251 = vpop.permute.xlu0 %2250
      %2252 = vrot.lane.b32.xlu0 %v2187, 124
      %v2253 = vpop.permute.xlu0 %2252
      %2254 = vrot.lane.b32.xlu0 %v2188, 124
      %v2255 = vpop.permute.xlu0 %2254
      %2256 = vrot.lane.b32.xlu0 %v2189, 124
      %v2257 = vpop.permute.xlu0 %2256
      %2258 = vrot.lane.b32.xlu0 %v2190, 124
      %v2259 = vpop.permute.xlu0 %2258
      %2260 = vrot.lane.b32.xlu0 %v2191, 124
      %v2261 = vpop.permute.xlu0 %2260
      %2262 = vrot.lane.b32.xlu0 %v2192, 124
      %v2263 = vpop.permute.xlu0 %2262
      %2264 = vrot.lane.b32.xlu0 %v2193, 124
      %v2265 = vpop.permute.xlu0 %2264
      %2266 = vrot.lane.b32.xlu0 %v2194, 124
      %v2267 = vpop.permute.xlu0 %2266
      %2268 = vrot.lane.b32.xlu0 %v2195, 124
      %v2269 = vpop.permute.xlu0 %2268
      %2270 = vrot.lane.b32.xlu0 %v2196, 124
      %v2271 = vpop.permute.xlu0 %2270
      %2272 = vrot.lane.b32.xlu0 %v2197, 124
      %v2273 = vpop.permute.xlu0 %2272
      %2274 = vrot.lane.b32.xlu0 %v2198, 124
      %v2275 = vpop.permute.xlu0 %2274
      %2276 = vrot.lane.b32.xlu0 %v2199, 124
      %v2277 = vpop.permute.xlu0 %2276
      %2278 = vrot.lane.b32.xlu0 %v2200, 124
      %v2279 = vpop.permute.xlu0 %2278
      %2280 = vrot.lane.b32.xlu0 %v2201, 124
      %v2281 = vpop.permute.xlu0 %2280
      %2282 = vrot.lane.b32.xlu0 %v2202, 124
      %v2283 = vpop.permute.xlu0 %2282
      %2284 = vrot.lane.b32.xlu0 %v2203, 124
      %v2285 = vpop.permute.xlu0 %2284
      %2286 = vrot.lane.b32.xlu0 %v2204, 124
      %v2287 = vpop.permute.xlu0 %2286
      %2288 = vrot.lane.b32.xlu0 %v2205, 124
      %v2289 = vpop.permute.xlu0 %2288
      %2290 = vrot.lane.b32.xlu0 %v2206, 124
      %v2291 = vpop.permute.xlu0 %2290
      %2292 = vrot.lane.b32.xlu0 %v2207, 124
      %v2293 = vpop.permute.xlu0 %2292
      %2294 = vrot.lane.b32.xlu0 %v2208, 124
      %v2295 = vpop.permute.xlu0 %2294
      %2296 = vrot.lane.b32.xlu0 %v2209, 124
      %v2297 = vpop.permute.xlu0 %2296
      %2298 = vrot.lane.b32.xlu0 %v2210, 124
      %v2299 = vpop.permute.xlu0 %2298
      %2300 = vrot.lane.b32.xlu0 %v2211, 124
      %v2301 = vpop.permute.xlu0 %2300
      %2302 = vrot.lane.b32.xlu0 %v2212, 124
      %v2303 = vpop.permute.xlu0 %2302
      %2304 = vrot.lane.b32.xlu0 %v2213, 124
      %v2305 = vpop.permute.xlu0 %2304
      %2306 = vrot.lane.b32.xlu0 %v2214, 124
      %v2307 = vpop.permute.xlu0 %2306
      %2308 = vrot.lane.b32.xlu0 %v2215, 124
      %v2309 = vpop.permute.xlu0 %2308
      %2310 = vrot.lane.b32.xlu0 %v2216, 124
      %v2311 = vpop.permute.xlu0 %2310
      %2312 = vrot.lane.b32.xlu0 %v2217, 124
      %v2313 = vpop.permute.xlu0 %2312
      %s2346 = scalar_lea.vmem %s194, 256
      %2347 = vst.msk [vmem:[%s2346] sm:$0xff] %vm1518, %v2251
      %2348 = vst.msk [vmem:[%s2346 + $0x8] sm:$0xff] %vm1518, %v2253
      %2349 = vst.msk [vmem:[%s2346 + $0x10] sm:$0xff] %vm1518, %v2255
      %2350 = vst.msk [vmem:[%s2346 + $0x18] sm:$0xff] %vm1518, %v2257
      %2351 = vst.msk [vmem:[%s2346 + $0x20] sm:$0xff] %vm1518, %v2259
      %2352 = vst.msk [vmem:[%s2346 + $0x28] sm:$0xff] %vm1518, %v2261
      %2353 = vst.msk [vmem:[%s2346 + $0x30] sm:$0xff] %vm1518, %v2263
      %2354 = vst.msk [vmem:[%s2346 + $0x38] sm:$0xff] %vm1518, %v2265
      %2355 = vst.msk [vmem:[%s2346 + $0x40] sm:$0xff] %vm1518, %v2267
      %2356 = vst.msk [vmem:[%s2346 + $0x48] sm:$0xff] %vm1518, %v2269
      %2357 = vst.msk [vmem:[%s2346 + $0x50] sm:$0xff] %vm1518, %v2271
      %2358 = vst.msk [vmem:[%s2346 + $0x58] sm:$0xff] %vm1518, %v2273
      %2359 = vst.msk [vmem:[%s2346 + $0x60] sm:$0xff] %vm1518, %v2275
      %2360 = vst.msk [vmem:[%s2346 + $0x68] sm:$0xff] %vm1518, %v2277
      %2361 = vst.msk [vmem:[%s2346 + $0x70] sm:$0xff] %vm1518, %v2279
      %2362 = vst.msk [vmem:[%s2346 + $0x78] sm:$0xff] %vm1518, %v2281
      %2363 = vst.msk [vmem:[%s2346 + $0x80] sm:$0xff] %vm1518, %v2283
      %2364 = vst.msk [vmem:[%s2346 + $0x88] sm:$0xff] %vm1518, %v2285
      %2365 = vst.msk [vmem:[%s2346 + $0x90] sm:$0xff] %vm1518, %v2287
      %2366 = vst.msk [vmem:[%s2346 + $0x98] sm:$0xff] %vm1518, %v2289
      %2367 = vst.msk [vmem:[%s2346 + $0xa0] sm:$0xff] %vm1518, %v2291
      %2368 = vst.msk [vmem:[%s2346 + $0xa8] sm:$0xff] %vm1518, %v2293
      %2369 = vst.msk [vmem:[%s2346 + $0xb0] sm:$0xff] %vm1518, %v2295
      %2370 = vst.msk [vmem:[%s2346 + $0xb8] sm:$0xff] %vm1518, %v2297
      %2371 = vst.msk [vmem:[%s2346 + $0xc0] sm:$0xff] %vm1518, %v2299
      %2372 = vst.msk [vmem:[%s2346 + $0xc8] sm:$0xff] %vm1518, %v2301
      %2373 = vst.msk [vmem:[%s2346 + $0xd0] sm:$0xff] %vm1518, %v2303
      %2374 = vst.msk [vmem:[%s2346 + $0xd8] sm:$0xff] %vm1518, %v2305
      %2375 = vst.msk [vmem:[%s2346 + $0xe0] sm:$0xff] %vm1518, %v2307
      %2376 = vst.msk [vmem:[%s2346 + $0xe8] sm:$0xff] %vm1518, %v2309
      %2377 = vst.msk [vmem:[%s2346 + $0xf0] sm:$0xff] %vm1518, %v2311
      %2378 = vst.msk [vmem:[%s2346 + $0xf8] sm:$0xff] %vm1518, %v2313
      %2379 = vrot.lane.b32.xlu0 %v2117, 8
      %v2380 = vpop.permute.xlu0 %2379
      %v2382 = vadd.f32 %v1955, %v2380
      %v2383 = vadd.f32 %v1960, %v2380
      %v2384 = vadd.f32 %v1965, %v2380
      %v2385 = vadd.f32 %v1970, %v2380
      %v2386 = vadd.f32 %v1975, %v2380
      %v2387 = vadd.f32 %v1980, %v2380
      %v2388 = vadd.f32 %v1985, %v2380
      %v2389 = vadd.f32 %v1990, %v2380
      %v2390 = vadd.f32 %v1995, %v2380
      %v2391 = vadd.f32 %v2000, %v2380
      %v2392 = vadd.f32 %v2005, %v2380
      %v2393 = vadd.f32 %v2010, %v2380
      %v2394 = vadd.f32 %v2015, %v2380
      %v2395 = vadd.f32 %v2020, %v2380
      %v2396 = vadd.f32 %v2025, %v2380
      %v2397 = vadd.f32 %v2030, %v2380
      %v2398 = vadd.f32 %v2035, %v2380
      %v2399 = vadd.f32 %v2040, %v2380
      %v2400 = vadd.f32 %v2045, %v2380
      %v2401 = vadd.f32 %v2050, %v2380
      %v2402 = vadd.f32 %v2055, %v2380
      %v2403 = vadd.f32 %v2060, %v2380
      %v2404 = vadd.f32 %v2065, %v2380
      %v2405 = vadd.f32 %v2070, %v2380
      %v2406 = vadd.f32 %v2075, %v2380
      %v2407 = vadd.f32 %v2080, %v2380
      %v2408 = vadd.f32 %v2085, %v2380
      %v2409 = vadd.f32 %v2090, %v2380
      %v2410 = vadd.f32 %v2095, %v2380
      %v2411 = vadd.f32 %v2100, %v2380
      %v2412 = vadd.f32 %v2105, %v2380
      %v2413 = vadd.f32 %v2110, %v2380
      %2446 = vrot.lane.b32.xlu0 %v2382, 120
      %v2447 = vpop.permute.xlu0 %2446
      %2448 = vrot.lane.b32.xlu0 %v2383, 120
      %v2449 = vpop.permute.xlu0 %2448
      %2450 = vrot.lane.b32.xlu0 %v2384, 120
      %v2451 = vpop.permute.xlu0 %2450
      %2452 = vrot.lane.b32.xlu0 %v2385, 120
      %v2453 = vpop.permute.xlu0 %2452
      %2454 = vrot.lane.b32.xlu0 %v2386, 120
      %v2455 = vpop.permute.xlu0 %2454
      %2456 = vrot.lane.b32.xlu0 %v2387, 120
      %v2457 = vpop.permute.xlu0 %2456
      %2458 = vrot.lane.b32.xlu0 %v2388, 120
      %v2459 = vpop.permute.xlu0 %2458
      %2460 = vrot.lane.b32.xlu0 %v2389, 120
      %v2461 = vpop.permute.xlu0 %2460
      %2462 = vrot.lane.b32.xlu0 %v2390, 120
      %v2463 = vpop.permute.xlu0 %2462
      %2464 = vrot.lane.b32.xlu0 %v2391, 120
      %v2465 = vpop.permute.xlu0 %2464
      %2466 = vrot.lane.b32.xlu0 %v2392, 120
      %v2467 = vpop.permute.xlu0 %2466
      %2468 = vrot.lane.b32.xlu0 %v2393, 120
      %v2469 = vpop.permute.xlu0 %2468
      %2470 = vrot.lane.b32.xlu0 %v2394, 120
      %v2471 = vpop.permute.xlu0 %2470
      %2472 = vrot.lane.b32.xlu0 %v2395, 120
      %v2473 = vpop.permute.xlu0 %2472
      %2474 = vrot.lane.b32.xlu0 %v2396, 120
      %v2475 = vpop.permute.xlu0 %2474
      %2476 = vrot.lane.b32.xlu0 %v2397, 120
      %v2477 = vpop.permute.xlu0 %2476
      %2478 = vrot.lane.b32.xlu0 %v2398, 120
      %v2479 = vpop.permute.xlu0 %2478
      %2480 = vrot.lane.b32.xlu0 %v2399, 120
      %v2481 = vpop.permute.xlu0 %2480
      %2482 = vrot.lane.b32.xlu0 %v2400, 120
      %v2483 = vpop.permute.xlu0 %2482
      %2484 = vrot.lane.b32.xlu0 %v2401, 120
      %v2485 = vpop.permute.xlu0 %2484
      %2486 = vrot.lane.b32.xlu0 %v2402, 120
      %v2487 = vpop.permute.xlu0 %2486
      %2488 = vrot.lane.b32.xlu0 %v2403, 120
      %v2489 = vpop.permute.xlu0 %2488
      %2490 = vrot.lane.b32.xlu0 %v2404, 120
      %v2491 = vpop.permute.xlu0 %2490
      %2492 = vrot.lane.b32.xlu0 %v2405, 120
      %v2493 = vpop.permute.xlu0 %2492
      %2494 = vrot.lane.b32.xlu0 %v2406, 120
      %v2495 = vpop.permute.xlu0 %2494
      %2496 = vrot.lane.b32.xlu0 %v2407, 120
      %v2497 = vpop.permute.xlu0 %2496
      %2498 = vrot.lane.b32.xlu0 %v2408, 120
      %v2499 = vpop.permute.xlu0 %2498
      %2500 = vrot.lane.b32.xlu0 %v2409, 120
      %v2501 = vpop.permute.xlu0 %2500
      %2502 = vrot.lane.b32.xlu0 %v2410, 120
      %v2503 = vpop.permute.xlu0 %2502
      %2504 = vrot.lane.b32.xlu0 %v2411, 120
      %v2505 = vpop.permute.xlu0 %2504
      %2506 = vrot.lane.b32.xlu0 %v2412, 120
      %v2507 = vpop.permute.xlu0 %2506
      %2508 = vrot.lane.b32.xlu0 %v2413, 120
      %v2509 = vpop.permute.xlu0 %2508
      %s2542 = scalar_lea.vmem %s194, 512
      %2543 = vst.msk [vmem:[%s2542] sm:$0xff] %vm1518, %v2447
      %2544 = vst.msk [vmem:[%s2542 + $0x8] sm:$0xff] %vm1518, %v2449
      %2545 = vst.msk [vmem:[%s2542 + $0x10] sm:$0xff] %vm1518, %v2451
      %2546 = vst.msk [vmem:[%s2542 + $0x18] sm:$0xff] %vm1518, %v2453
      %2547 = vst.msk [vmem:[%s2542 + $0x20] sm:$0xff] %vm1518, %v2455
      %2548 = vst.msk [vmem:[%s2542 + $0x28] sm:$0xff] %vm1518, %v2457
      %2549 = vst.msk [vmem:[%s2542 + $0x30] sm:$0xff] %vm1518, %v2459
      %2550 = vst.msk [vmem:[%s2542 + $0x38] sm:$0xff] %vm1518, %v2461
      %2551 = vst.msk [vmem:[%s2542 + $0x40] sm:$0xff] %vm1518, %v2463
      %2552 = vst.msk [vmem:[%s2542 + $0x48] sm:$0xff] %vm1518, %v2465
      %2553 = vst.msk [vmem:[%s2542 + $0x50] sm:$0xff] %vm1518, %v2467
      %2554 = vst.msk [vmem:[%s2542 + $0x58] sm:$0xff] %vm1518, %v2469
      %2555 = vst.msk [vmem:[%s2542 + $0x60] sm:$0xff] %vm1518, %v2471
      %2556 = vst.msk [vmem:[%s2542 + $0x68] sm:$0xff] %vm1518, %v2473
      %2557 = vst.msk [vmem:[%s2542 + $0x70] sm:$0xff] %vm1518, %v2475
      %2558 = vst.msk [vmem:[%s2542 + $0x78] sm:$0xff] %vm1518, %v2477
      %2559 = vst.msk [vmem:[%s2542 + $0x80] sm:$0xff] %vm1518, %v2479
      %2560 = vst.msk [vmem:[%s2542 + $0x88] sm:$0xff] %vm1518, %v2481
      %2561 = vst.msk [vmem:[%s2542 + $0x90] sm:$0xff] %vm1518, %v2483
      %2562 = vst.msk [vmem:[%s2542 + $0x98] sm:$0xff] %vm1518, %v2485
      %2563 = vst.msk [vmem:[%s2542 + $0xa0] sm:$0xff] %vm1518, %v2487
      %2564 = vst.msk [vmem:[%s2542 + $0xa8] sm:$0xff] %vm1518, %v2489
      %2565 = vst.msk [vmem:[%s2542 + $0xb0] sm:$0xff] %vm1518, %v2491
      %2566 = vst.msk [vmem:[%s2542 + $0xb8] sm:$0xff] %vm1518, %v2493
      %2567 = vst.msk [vmem:[%s2542 + $0xc0] sm:$0xff] %vm1518, %v2495
      %2568 = vst.msk [vmem:[%s2542 + $0xc8] sm:$0xff] %vm1518, %v2497
      %2569 = vst.msk [vmem:[%s2542 + $0xd0] sm:$0xff] %vm1518, %v2499
      %2570 = vst.msk [vmem:[%s2542 + $0xd8] sm:$0xff] %vm1518, %v2501
      %2571 = vst.msk [vmem:[%s2542 + $0xe0] sm:$0xff] %vm1518, %v2503
      %2572 = vst.msk [vmem:[%s2542 + $0xe8] sm:$0xff] %vm1518, %v2505
      %2573 = vst.msk [vmem:[%s2542 + $0xf0] sm:$0xff] %vm1518, %v2507
      %2574 = vst.msk [vmem:[%s2542 + $0xf8] sm:$0xff] %vm1518, %v2509
      %2575 = vrot.lane.b32.xlu0 %v2117, 12
      %v2576 = vpop.permute.xlu0 %2575
      %v2578 = vadd.f32 %v1955, %v2576
      %v2579 = vadd.f32 %v1960, %v2576
      %v2580 = vadd.f32 %v1965, %v2576
      %v2581 = vadd.f32 %v1970, %v2576
      %v2582 = vadd.f32 %v1975, %v2576
      %v2583 = vadd.f32 %v1980, %v2576
      %v2584 = vadd.f32 %v1985, %v2576
      %v2585 = vadd.f32 %v1990, %v2576
      %v2586 = vadd.f32 %v1995, %v2576
      %v2587 = vadd.f32 %v2000, %v2576
      %v2588 = vadd.f32 %v2005, %v2576
      %v2589 = vadd.f32 %v2010, %v2576
      %v2590 = vadd.f32 %v2015, %v2576
      %v2591 = vadd.f32 %v2020, %v2576
      %v2592 = vadd.f32 %v2025, %v2576
      %v2593 = vadd.f32 %v2030, %v2576
      %v2594 = vadd.f32 %v2035, %v2576
      %v2595 = vadd.f32 %v2040, %v2576
      %v2596 = vadd.f32 %v2045, %v2576
      %v2597 = vadd.f32 %v2050, %v2576
      %v2598 = vadd.f32 %v2055, %v2576
      %v2599 = vadd.f32 %v2060, %v2576
      %v2600 = vadd.f32 %v2065, %v2576
      %v2601 = vadd.f32 %v2070, %v2576
      %v2602 = vadd.f32 %v2075, %v2576
      %v2603 = vadd.f32 %v2080, %v2576
      %v2604 = vadd.f32 %v2085, %v2576
      %v2605 = vadd.f32 %v2090, %v2576
      %v2606 = vadd.f32 %v2095, %v2576
      %v2607 = vadd.f32 %v2100, %v2576
      %v2608 = vadd.f32 %v2105, %v2576
      %v2609 = vadd.f32 %v2110, %v2576
      %2642 = vrot.lane.b32.xlu0 %v2578, 116
      %v2643 = vpop.permute.xlu0 %2642
      %2644 = vrot.lane.b32.xlu0 %v2579, 116
      %v2645 = vpop.permute.xlu0 %2644
      %2646 = vrot.lane.b32.xlu0 %v2580, 116
      %v2647 = vpop.permute.xlu0 %2646
      %2648 = vrot.lane.b32.xlu0 %v2581, 116
      %v2649 = vpop.permute.xlu0 %2648
      %2650 = vrot.lane.b32.xlu0 %v2582, 116
      %v2651 = vpop.permute.xlu0 %2650
      %2652 = vrot.lane.b32.xlu0 %v2583, 116
      %v2653 = vpop.permute.xlu0 %2652
      %2654 = vrot.lane.b32.xlu0 %v2584, 116
      %v2655 = vpop.permute.xlu0 %2654
      %2656 = vrot.lane.b32.xlu0 %v2585, 116
      %v2657 = vpop.permute.xlu0 %2656
      %2658 = vrot.lane.b32.xlu0 %v2586, 116
      %v2659 = vpop.permute.xlu0 %2658
      %2660 = vrot.lane.b32.xlu0 %v2587, 116
      %v2661 = vpop.permute.xlu0 %2660
      %2662 = vrot.lane.b32.xlu0 %v2588, 116
      %v2663 = vpop.permute.xlu0 %2662
      %2664 = vrot.lane.b32.xlu0 %v2589, 116
      %v2665 = vpop.permute.xlu0 %2664
      %2666 = vrot.lane.b32.xlu0 %v2590, 116
      %v2667 = vpop.permute.xlu0 %2666
      %2668 = vrot.lane.b32.xlu0 %v2591, 116
      %v2669 = vpop.permute.xlu0 %2668
      %2670 = vrot.lane.b32.xlu0 %v2592, 116
      %v2671 = vpop.permute.xlu0 %2670
      %2672 = vrot.lane.b32.xlu0 %v2593, 116
      %v2673 = vpop.permute.xlu0 %2672
      %2674 = vrot.lane.b32.xlu0 %v2594, 116
      %v2675 = vpop.permute.xlu0 %2674
      %2676 = vrot.lane.b32.xlu0 %v2595, 116
      %v2677 = vpop.permute.xlu0 %2676
      %2678 = vrot.lane.b32.xlu0 %v2596, 116
      %v2679 = vpop.permute.xlu0 %2678
      %2680 = vrot.lane.b32.xlu0 %v2597, 116
      %v2681 = vpop.permute.xlu0 %2680
      %2682 = vrot.lane.b32.xlu0 %v2598, 116
      %v2683 = vpop.permute.xlu0 %2682
      %2684 = vrot.lane.b32.xlu0 %v2599, 116
      %v2685 = vpop.permute.xlu0 %2684
      %2686 = vrot.lane.b32.xlu0 %v2600, 116
      %v2687 = vpop.permute.xlu0 %2686
      %2688 = vrot.lane.b32.xlu0 %v2601, 116
      %v2689 = vpop.permute.xlu0 %2688
      %2690 = vrot.lane.b32.xlu0 %v2602, 116
      %v2691 = vpop.permute.xlu0 %2690
      %2692 = vrot.lane.b32.xlu0 %v2603, 116
      %v2693 = vpop.permute.xlu0 %2692
      %2694 = vrot.lane.b32.xlu0 %v2604, 116
      %v2695 = vpop.permute.xlu0 %2694
      %2696 = vrot.lane.b32.xlu0 %v2605, 116
      %v2697 = vpop.permute.xlu0 %2696
      %2698 = vrot.lane.b32.xlu0 %v2606, 116
      %v2699 = vpop.permute.xlu0 %2698
      %2700 = vrot.lane.b32.xlu0 %v2607, 116
      %v2701 = vpop.permute.xlu0 %2700
      %2702 = vrot.lane.b32.xlu0 %v2608, 116
      %v2703 = vpop.permute.xlu0 %2702
      %2704 = vrot.lane.b32.xlu0 %v2609, 116
      %v2705 = vpop.permute.xlu0 %2704
      %s2738 = scalar_lea.vmem %s194, 768
      %2739 = vst.msk [vmem:[%s2738] sm:$0xff] %vm1518, %v2643
      %2740 = vst.msk [vmem:[%s2738 + $0x8] sm:$0xff] %vm1518, %v2645
      %2741 = vst.msk [vmem:[%s2738 + $0x10] sm:$0xff] %vm1518, %v2647
      %2742 = vst.msk [vmem:[%s2738 + $0x18] sm:$0xff] %vm1518, %v2649
      %2743 = vst.msk [vmem:[%s2738 + $0x20] sm:$0xff] %vm1518, %v2651
      %2744 = vst.msk [vmem:[%s2738 + $0x28] sm:$0xff] %vm1518, %v2653
      %2745 = vst.msk [vmem:[%s2738 + $0x30] sm:$0xff] %vm1518, %v2655
      %2746 = vst.msk [vmem:[%s2738 + $0x38] sm:$0xff] %vm1518, %v2657
      %2747 = vst.msk [vmem:[%s2738 + $0x40] sm:$0xff] %vm1518, %v2659
      %2748 = vst.msk [vmem:[%s2738 + $0x48] sm:$0xff] %vm1518, %v2661
      %2749 = vst.msk [vmem:[%s2738 + $0x50] sm:$0xff] %vm1518, %v2663
      %2750 = vst.msk [vmem:[%s2738 + $0x58] sm:$0xff] %vm1518, %v2665
      %2751 = vst.msk [vmem:[%s2738 + $0x60] sm:$0xff] %vm1518, %v2667
      %2752 = vst.msk [vmem:[%s2738 + $0x68] sm:$0xff] %vm1518, %v2669
      %2753 = vst.msk [vmem:[%s2738 + $0x70] sm:$0xff] %vm1518, %v2671
      %2754 = vst.msk [vmem:[%s2738 + $0x78] sm:$0xff] %vm1518, %v2673
      %2755 = vst.msk [vmem:[%s2738 + $0x80] sm:$0xff] %vm1518, %v2675
      %2756 = vst.msk [vmem:[%s2738 + $0x88] sm:$0xff] %vm1518, %v2677
      %2757 = vst.msk [vmem:[%s2738 + $0x90] sm:$0xff] %vm1518, %v2679
      %2758 = vst.msk [vmem:[%s2738 + $0x98] sm:$0xff] %vm1518, %v2681
      %2759 = vst.msk [vmem:[%s2738 + $0xa0] sm:$0xff] %vm1518, %v2683
      %2760 = vst.msk [vmem:[%s2738 + $0xa8] sm:$0xff] %vm1518, %v2685
      %2761 = vst.msk [vmem:[%s2738 + $0xb0] sm:$0xff] %vm1518, %v2687
      %2762 = vst.msk [vmem:[%s2738 + $0xb8] sm:$0xff] %vm1518, %v2689
      %2763 = vst.msk [vmem:[%s2738 + $0xc0] sm:$0xff] %vm1518, %v2691
      %2764 = vst.msk [vmem:[%s2738 + $0xc8] sm:$0xff] %vm1518, %v2693
      %2765 = vst.msk [vmem:[%s2738 + $0xd0] sm:$0xff] %vm1518, %v2695
      %2766 = vst.msk [vmem:[%s2738 + $0xd8] sm:$0xff] %vm1518, %v2697
      %2767 = vst.msk [vmem:[%s2738 + $0xe0] sm:$0xff] %vm1518, %v2699
      %2768 = vst.msk [vmem:[%s2738 + $0xe8] sm:$0xff] %vm1518, %v2701
      %2769 = vst.msk [vmem:[%s2738 + $0xf0] sm:$0xff] %vm1518, %v2703
      %2770 = vst.msk [vmem:[%s2738 + $0xf8] sm:$0xff] %vm1518, %v2705
      %s2771 = smul.u32 16, %s19
      %p2772 = scmp.lt.s32.totalorder %s18, 1
      %s2773 = scalar_select %p2772, %s18, 1
      %p2774 = scmp.lt.s32.totalorder %s2771, 15
      %s2775 = scalar_select %p2774, %s2771, 15
      %s2776 = smul.addr %s2775, 2
      %s2777 = smul.addr %s2773, 128
      %s2778 = sadd.s32 %s2776, %s2777
      %s2779 = smul.addr %s2778, 8
      %s2780 = scalar_lea.vmem %s3, %s2779
      // Predicated region
      $region33: #{tpu_custom_call.1} parent=31 // pred_check
        %p2781 = pneg %p114
      $region34: #{tpu_custom_call.1} parent=31 // pred_check_branch
        %2783 = sbr.rel (%p2781) target = $region36
      $region35: #{tpu_custom_call.1} parent=31 // pred_region
        %s2784 = smul.u32 16, %s19
      $region36: #{tpu_custom_call.1} parent=31 // pred_fallthru
        _
    $region32: #{tpu_custom_call.1} parent=5 // pred_fallthru
      _
    %p2785 = scmp.le.s32.totalorder 2, %s9
    // Predicated region
    $region37: #{tpu_custom_call.1} parent=5 // pred_check
      %p2786 = pneg %p2785
    $region38: #{tpu_custom_call.1} parent=5 // pred_check_branch
      %2788 = sbr.rel (%p2786) target = $region40
    $region39: #{tpu_custom_call.1} parent=5 // pred_region
      %s2789 = ssub.s32 %s9, 2
      // Predicated region
      $region41: #{tpu_custom_call.1} parent=39 // pred_check
        %p2790 = pneg %p120
      $region42: #{tpu_custom_call.1} parent=39 // pred_check_branch
        %2792 = sbr.rel (%p2790) target = $region44
      $region43: #{tpu_custom_call.1} parent=39 // pred_region
        %s2793 = smul.u32 16, %s21
        %p2794 = scmp.lt.s32.totalorder %s20, 1
        %s2795 = scalar_select %p2794, %s20, 1
        %p2796 = scmp.lt.s32.totalorder %s2793, 15
        %s2797 = scalar_select %p2796, %s2793, 15
        %s2798 = smul.addr %s2797, 2
        %s2799 = smul.addr %s2795, 128
        %s2800 = sadd.s32 %s2798, %s2799
        %s2801 = smul.addr %s2800, 8
        %s2802 = scalar_lea.vmem %s3, %s2801
      $region44: #{tpu_custom_call.1} parent=39 // pred_fallthru
        _
    $region40: #{tpu_custom_call.1} parent=5 // pred_fallthru
      _
  $region6: #{tpu_custom_call.1} parent=0 // loop_footer
    %s13 = sadd.s32 1, %s9
  $region7: #{tpu_custom_call.1} parent=0 // loop_footer_branch
    %8 = sbr.rel target = $region3
  $region8: #{tpu_custom_call.1} parent=0 // loop_exit
    _

</llo_original>
